<compile_context>
chip_gen: v6e
topology: v6e:2x2x1
jax: 0.10.0
libtpu: 0.0.40
codegen_flags: <defaults>
</compile_context>

<pallas_src>
import jax
import jax.numpy as jnp
from jax import lax
from jax.experimental import pallas as pl
from jax.experimental.pallas import tpu as pltpu


def conv3x3_kernel(x_ref, w_ref, b_ref, o_ref, xpad_ref):
    """One image per grid step.

    x_ref   : (1, H, W, Cin)      bf16 NHWC input tile (VMEM)
    w_ref   : (Cout8, 9*Cin)      bf16 im2col weight matrix, K order (kh,kw,c)
    b_ref   : (Cout8, 1)          f32 bias column
    o_ref   : (1, Cout8, H*W)     f32 channel-major output tile (lane-dense)
    xpad_ref: (H+2, W+2, Cin)     bf16 scratch: zero-padded image (padding=1)
    """
    H = x_ref.shape[1]
    W = x_ref.shape[2]
    Cin = x_ref.shape[3]
    dt = xpad_ref.dtype

    # padding=1: zero ONLY the halo ring (every step; see header comment about
    # megacore scratch), then overwrite the interior with this step's image.
    xpad_ref[0:1, :, :] = jnp.zeros((1, W + 2, Cin), dt)
    xpad_ref[H + 1:H + 2, :, :] = jnp.zeros((1, W + 2, Cin), dt)
    xpad_ref[1:H + 1, 0:1, :] = jnp.zeros((H, 1, Cin), dt)
    xpad_ref[1:H + 1, W + 1:W + 2, :] = jnp.zeros((H, 1, Cin), dt)
    xpad_ref[1:H + 1, 1:W + 1, :] = x_ref[0]

    xp = xpad_ref[...]                                   # (H+2, W+2, Cin) bf16

    # im2col in registers: 9 shifted views concatenated along channels.
    # patches[h*W + w, (kh*3 + kw)*Cin + c] = xpad[h+kh, w+kw, c]
    taps = [xp[kh:kh + H, kw:kw + W, :]
            for kh in range(3) for kw in range(3)]
    patches = jnp.concatenate(taps, axis=-1).reshape(H * W, 9 * Cin)

    # Single MXU matmul, bf16 operands / f32 accumulation, computed transposed
    # so the result (Cout8, H*W) is lane-dense and already channel-major.
    acc = lax.dot_general(
        w_ref[...], patches,
        dimension_numbers=(((1,), (1,)), ((), ())),
        preferred_element_type=jnp.float32)              # (Cout8, H*W) f32
    acc = acc + b_ref[...]                               # f32 bias, lane bcast
    o_ref[...] = acc.astype(o_ref.dtype).reshape(o_ref.shape)


def cnn_block_forward(x_nchw, weight, bias):
    """PyTorch-equivalent forward of CNN_Block (Conv2d 3x3, stride 1, padding 1).

    x_nchw : (N, Cin, H, W) float32
    weight : (Cout, Cin, 3, 3)   (PyTorch conv weight layout)
    bias   : (Cout,)
    returns: (N, Cout, H, W) float32
    """
    N, Cin, H, W = x_nchw.shape
    Cout = weight.shape[0]
    COUT8 = ((Cout + 7) // 8) * 8          # sublane-pad only (no 128 padding)

    # NCHW -> NHWC and bf16 cast in one fused XLA op (halves input DMA bytes).
    x_nhwc = jnp.transpose(x_nchw, (0, 2, 3, 1)).astype(jnp.bfloat16)

    # Weight -> (Cout8, 9*Cin), K order (kh, kw, cin) matching the kernel's
    # concat order; padded rows get zero weight/bias and are sliced off below.
    w_mat = jnp.transpose(weight, (0, 2, 3, 1)).reshape(Cout, 9 * Cin)
    w_mat = jnp.zeros((COUT8, 9 * Cin), jnp.bfloat16).at[:Cout].set(
        w_mat.astype(jnp.bfloat16))
    b_col = jnp.zeros((COUT8, 1), jnp.float32).at[:Cout, 0].set(
        bias.astype(jnp.float32))

    cost = pl.CostEstimate(
        flops=2 * N * H * W * 9 * Cin * COUT8,
        transcendentals=0,
        bytes_accessed=(N * H * W * Cin * 2           # bf16 activations in
                        + COUT8 * 9 * Cin * 2         # bf16 weights
                        + COUT8 * 4                   # f32 bias
                        + N * COUT8 * H * W * 4),     # f32 writeback (unpadded)
    )

    out = pl.pallas_call(
        conv3x3_kernel,
        out_shape=jax.ShapeDtypeStruct((N, COUT8, H * W), jnp.float32),
        grid_spec=pltpu.PrefetchScalarGridSpec(
            num_scalar_prefetch=0,
            grid=(N,),     # >=2 parallel grid points -> both v7x TCs busy
            in_specs=[
                pl.BlockSpec((1, H, W, Cin), lambda n: (n, 0, 0, 0)),
                pl.BlockSpec((COUT8, 9 * Cin), lambda n: (0, 0)),
                pl.BlockSpec((COUT8, 1), lambda n: (0, 0)),
            ],
            out_specs=pl.BlockSpec((1, COUT8, H * W), lambda n: (n, 0, 0)),
            scratch_shapes=[
                pltpu.VMEM((H + 2, W + 2, Cin), jnp.bfloat16),
            ],
        ),
        compiler_params=pltpu.CompilerParams(
            dimension_semantics=("parallel",),
        ),
        cost_estimate=cost,
    )(x_nhwc, w_mat, b_col)

    # Already channel-major: drop Cout padding (no-op when Cout % 8 == 0) and
    # reshape the flattened spatial axis.  No output transpose needed.
    return out[:, :Cout, :].reshape(N, Cout, H, W)


def reference_conv(x_nchw, weight, bias):
    out = lax.conv_general_dilated(
        x_nchw, weight,
        window_strides=(1, 1),
        padding=((1, 1), (1, 1)),
        dimension_numbers=("NCHW", "OIHW", "NCHW"),
    )
    return out + bias.reshape(1, -1, 1, 1)


if __name__ == "__main__":
    # Small shapes consistent with the module: batch=2, Cin=4, Cout=8, 16x16.
    N, Cin, Cout, H, W = 2, 4, 8, 16, 16

    key = jax.random.PRNGKey(0)
    kx, kw, kb = jax.random.split(key, 3)

    x = jax.random.normal(kx, (N, Cin, H, W), dtype=jnp.float32)
    # Deterministic parameter init (PyTorch-like uniform fan-in bound).
    fan_in = Cin * 3 * 3
    bound = 1.0 / (fan_in ** 0.5)
    weight = jax.random.uniform(kw, (Cout, Cin, 3, 3), jnp.float32, -bound, bound)
    bias = jax.random.uniform(kb, (Cout,), jnp.float32, -bound, bound)

    forward = jax.jit(cnn_block_forward)
    out = jax.block_until_ready(forward(x, weight, bias))
    ref = jax.block_until_ready(reference_conv(x, weight, bias))

    assert out.shape == (N, Cout, H, W)
    # bf16 MXU operands vs f32 reference: loosened tolerance.
    max_err = jnp.max(jnp.abs(out - ref))
    assert jnp.allclose(out, ref, atol=5e-2, rtol=5e-2), (
        f"max abs err = {max_err}"
    )

    print("KERNEL_OK")
</pallas_src>

<mosaic_0001>
module attributes {stable_mosaic.version = 11 : i64} {
  func.func @conv3x3_kernel(%arg0: i32, %arg1: memref<1x16x16x4xbf16, #tpu.memory_space<vmem>>, %arg2: memref<8x36xbf16, #tpu.memory_space<vmem>>, %arg3: memref<8x1xf32, #tpu.memory_space<vmem>>, %arg4: memref<1x8x256xf32, #tpu.memory_space<vmem>>, %arg5: memref<18x18x4xbf16, #tpu.memory_space<vmem>>) attributes {dimension_semantics = [#tpu.dimension_semantics<parallel>], iteration_bounds = array<i64: 2>, scalar_prefetch = 0 : i64, scratch_operands = 1 : i64, tpu.core_type = #tpu.core_type<tc>, window_params = [{transform_indices = @transform_0, window_bounds = array<i64: 1, 16, 16, 4>}, {pipeline_mode = #tpu.pipeline_mode<synchronous>, transform_indices = @transform_1, window_bounds = array<i64: 8, 36>}, {pipeline_mode = #tpu.pipeline_mode<synchronous>, transform_indices = @transform_2, window_bounds = array<i64: 8, 1>}, {transform_indices = @transform_3, window_bounds = array<i64: 1, 8, 256>}]} {
    %cst = arith.constant 0.000000e+00 : bf16
    %0 = vector.broadcast %cst : bf16 to vector<1x18x4xbf16>
    %c0 = arith.constant 0 : index
    %c0_0 = arith.constant 0 : index
    %c0_1 = arith.constant 0 : index
    %1 = vector.load %arg5[%c0, %c0_0, %c0_1] : memref<18x18x4xbf16, #tpu.memory_space<vmem>>, vector<1x18x4xbf16>
    tpu.vector_store %arg5[%c0, %c0_0, %c0_1], %0 {strides = array<i32>} : memref<18x18x4xbf16, #tpu.memory_space<vmem>>, vector<1x18x4xbf16>,
    %cst_2 = arith.constant 0.000000e+00 : bf16
    %2 = vector.broadcast %cst_2 : bf16 to vector<1x18x4xbf16>
    %c17 = arith.constant 17 : index
    %c0_3 = arith.constant 0 : index
    %c0_4 = arith.constant 0 : index
    %3 = vector.load %arg5[%c17, %c0_3, %c0_4] : memref<18x18x4xbf16, #tpu.memory_space<vmem>>, vector<1x18x4xbf16>
    tpu.vector_store %arg5[%c17, %c0_3, %c0_4], %2 {strides = array<i32>} : memref<18x18x4xbf16, #tpu.memory_space<vmem>>, vector<1x18x4xbf16>,
    %cst_5 = arith.constant 0.000000e+00 : bf16
    %4 = vector.broadcast %cst_5 : bf16 to vector<16x1x4xbf16>
    %c1 = arith.constant 1 : index
    %c0_6 = arith.constant 0 : index
    %c0_7 = arith.constant 0 : index
    %5 = vector.load %arg5[%c1, %c0_6, %c0_7] : memref<18x18x4xbf16, #tpu.memory_space<vmem>>, vector<16x1x4xbf16>
    tpu.vector_store %arg5[%c1, %c0_6, %c0_7], %4 {strides = array<i32>} : memref<18x18x4xbf16, #tpu.memory_space<vmem>>, vector<16x1x4xbf16>,
    %cst_8 = arith.constant 0.000000e+00 : bf16
    %6 = vector.broadcast %cst_8 : bf16 to vector<16x1x4xbf16>
    %c1_9 = arith.constant 1 : index
    %c17_10 = arith.constant 17 : index
    %c0_11 = arith.constant 0 : index
    %7 = vector.load %arg5[%c1_9, %c17_10, %c0_11] : memref<18x18x4xbf16, #tpu.memory_space<vmem>>, vector<16x1x4xbf16>
    tpu.vector_store %arg5[%c1_9, %c17_10, %c0_11], %6 {strides = array<i32>} : memref<18x18x4xbf16, #tpu.memory_space<vmem>>, vector<16x1x4xbf16>,
    %c0_12 = arith.constant 0 : index
    %c0_13 = arith.constant 0 : index
    %c0_14 = arith.constant 0 : index
    %c0_15 = arith.constant 0 : index
    %8 = vector.load %arg1[%c0_12, %c0_13, %c0_14, %c0_15] : memref<1x16x16x4xbf16, #tpu.memory_space<vmem>>, vector<1x16x16x4xbf16>
    %9 = vector.shape_cast %8 : vector<1x16x16x4xbf16> to vector<16x16x4xbf16>
    %c1_16 = arith.constant 1 : index
    %c1_17 = arith.constant 1 : index
    %c0_18 = arith.constant 0 : index
    %10 = vector.load %arg5[%c1_16, %c1_17, %c0_18] : memref<18x18x4xbf16, #tpu.memory_space<vmem>>, vector<16x16x4xbf16>
    tpu.vector_store %arg5[%c1_16, %c1_17, %c0_18], %9 {strides = array<i32>} : memref<18x18x4xbf16, #tpu.memory_space<vmem>>, vector<16x16x4xbf16>,
    %c0_19 = arith.constant 0 : index
    %c0_20 = arith.constant 0 : index
    %c0_21 = arith.constant 0 : index
    %11 = vector.load %arg5[%c0_19, %c0_20, %c0_21] : memref<18x18x4xbf16, #tpu.memory_space<vmem>>, vector<18x18x4xbf16>
    %12 = vector.extract_strided_slice %11 {offsets = [0, 0, 0], sizes = [16, 16, 4], strides = [1, 1, 1]} : vector<18x18x4xbf16> to vector<16x16x4xbf16>
    %13 = vector.extract_strided_slice %11 {offsets = [0, 1, 0], sizes = [16, 16, 4], strides = [1, 1, 1]} : vector<18x18x4xbf16> to vector<16x16x4xbf16>
    %14 = vector.extract_strided_slice %11 {offsets = [0, 2, 0], sizes = [16, 16, 4], strides = [1, 1, 1]} : vector<18x18x4xbf16> to vector<16x16x4xbf16>
    %15 = vector.extract_strided_slice %11 {offsets = [1, 0, 0], sizes = [16, 16, 4], strides = [1, 1, 1]} : vector<18x18x4xbf16> to vector<16x16x4xbf16>
    %16 = vector.extract_strided_slice %11 {offsets = [1, 1, 0], sizes = [16, 16, 4], strides = [1, 1, 1]} : vector<18x18x4xbf16> to vector<16x16x4xbf16>
    %17 = vector.extract_strided_slice %11 {offsets = [1, 2, 0], sizes = [16, 16, 4], strides = [1, 1, 1]} : vector<18x18x4xbf16> to vector<16x16x4xbf16>
    %18 = vector.extract_strided_slice %11 {offsets = [2, 0, 0], sizes = [16, 16, 4], strides = [1, 1, 1]} : vector<18x18x4xbf16> to vector<16x16x4xbf16>
    %19 = vector.extract_strided_slice %11 {offsets = [2, 1, 0], sizes = [16, 16, 4], strides = [1, 1, 1]} : vector<18x18x4xbf16> to vector<16x16x4xbf16>
    %20 = vector.extract_strided_slice %11 {offsets = [2, 2, 0], sizes = [16, 16, 4], strides = [1, 1, 1]} : vector<18x18x4xbf16> to vector<16x16x4xbf16>
    %21 = tpu.concatenate %12, %13, %14, %15, %16, %17, %18, %19, %20 in 2 : vector<16x16x4xbf16>, vector<16x16x4xbf16>, vector<16x16x4xbf16>, vector<16x16x4xbf16>, vector<16x16x4xbf16>, vector<16x16x4xbf16>, vector<16x16x4xbf16>, vector<16x16x4xbf16>, vector<16x16x4xbf16> -> vector<16x16x36xbf16>
    %22 = vector.shape_cast %21 : vector<16x16x36xbf16> to vector<256x36xbf16>
    %c0_22 = arith.constant 0 : index
    %c0_23 = arith.constant 0 : index
    %23 = vector.load %arg2[%c0_22, %c0_23] : memref<8x36xbf16, #tpu.memory_space<vmem>>, vector<8x36xbf16>
    %cst_24 = arith.constant dense<0.000000e+00> : vector<8x256xf32>
    %24 = tpu.matmul %23, %22, %cst_24 {dimension_numbers = #tpu.dot_dimension_numbers<[1], [1], [0], [0], [0, 0, 1, 0], [], []>} : vector<8x36xbf16>, vector<256x36xbf16>, vector<8x256xf32> -> vector<8x256xf32>
    %c0_25 = arith.constant 0 : index
    %c0_26 = arith.constant 0 : index
    %25 = vector.load %arg3[%c0_25, %c0_26] : memref<8x1xf32, #tpu.memory_space<vmem>>, vector<8x1xf32>
    %26 = vector.broadcast %25 : vector<8x1xf32> to vector<8x256xf32>
    %27 = arith.addf %24, %26 : vector<8x256xf32>
    %28 = vector.shape_cast %27 : vector<8x256xf32> to vector<1x8x256xf32>
    %c0_27 = arith.constant 0 : index
    %c0_28 = arith.constant 0 : index
    %c0_29 = arith.constant 0 : index
    %29 = vector.load %arg4[%c0_27, %c0_28, %c0_29] : memref<1x8x256xf32, #tpu.memory_space<vmem>>, vector<1x8x256xf32>
    tpu.vector_store %arg4[%c0_27, %c0_28, %c0_29], %28 {strides = array<i32>} : memref<1x8x256xf32, #tpu.memory_space<vmem>>, vector<1x8x256xf32>,
    return
  }
  func.func @transform_0(%arg0: i32) -> (i32, i32, i32, i32) {
    %c0_i32 = arith.constant 0 : i32
    %c0_i32_0 = arith.constant 0 : i32
    %c0_i32_1 = arith.constant 0 : i32
    %c0_i32_2 = arith.constant 0 : i32
    return %arg0, %c0_i32, %c0_i32_0, %c0_i32_1 : i32, i32, i32, i32
  }
  func.func @transform_1(%arg0: i32) -> (i32, i32) {
    %c0_i32 = arith.constant 0 : i32
    %c0_i32_0 = arith.constant 0 : i32
    %c0_i32_1 = arith.constant 0 : i32
    return %c0_i32, %c0_i32_0 : i32, i32
  }
  func.func @transform_2(%arg0: i32) -> (i32, i32) {
    %c0_i32 = arith.constant 0 : i32
    %c0_i32_0 = arith.constant 0 : i32
    %c0_i32_1 = arith.constant 0 : i32
    return %c0_i32, %c0_i32_0 : i32, i32
  }
  func.func @transform_3(%arg0: i32) -> (i32, i32, i32) {
    %c0_i32 = arith.constant 0 : i32
    %c0_i32_0 = arith.constant 0 : i32
    %c0_i32_1 = arith.constant 0 : i32
    return %arg0, %c0_i32, %c0_i32_0 : i32, i32, i32
  }
}

</mosaic_0001>

<llo_original>
// kernel: cnn_block_forward.1
$region0: #{cnn_block_forward.1}
  #allocation0 [shape = 'u32[]', space=smem, size = 0x4, offset = 0x4, fixed_abs, tag = 'smem constant byte address 0x4 - core index']
  #allocation1 [shape = 'u32[144,128]{1,0:T(1,128)}', space=vmem, size = 0x12000, scoped, tag = 'internal scratch']
  #allocation2 [shape = 'bf16[18,18,4]{2,1,0:T(8,128)(2,1)}', space=vmem, size = 0x1b000, scoped, tag = 'scratch operand']
  %s0 = inlined_call_operand.vmem [shape: bf16[2,16,16,4], index: 0, kind: input, shape index: {}]
  %s1 = inlined_call_operand.vmem [shape: bf16[8,36], index: 1, kind: input, shape index: {}]
  %s2 = inlined_call_operand.vmem [shape: f32[8,1], index: 2, kind: input, shape index: {}]
  %s3 = inlined_call_operand.vmem [shape: f32[2,8,256], index: 3, kind: output, shape index: {}]
  %s4 = sld [smem:[#allocation0]]
  $region45: #{cnn_block_forward.1} parent=0
    _
  %s6 = ssub.s32 1, %s4
  %s7 = scalar_select 0, %s6, %s4
  loop: start=0, step=1, limit=4
  $region2: #{cnn_block_forward.1} parent=0 // loop_pre_header
    _
  $region3: #{cnn_block_forward.1} parent=0 // loop_header
    %s9 = sphi 0, %s13
    %p10 = scmp.ge.s32.totalorder %s9, 4
    %s19 = sphi 0, %s21
    %s22 = sphi 0, %s19
    %s23 = sphi 0, %s22
    %s39 = sphi 0, %s23
    %s43 = sphi 0, %s43
    %s45 = sphi 0, %s43
    %s46 = sphi 0, %s45
    %s60 = sphi 0, %s46
    %s64 = sphi 0, %s64
    %s66 = sphi 0, %s64
    %s67 = sphi 0, %s66
    %s81 = sphi 0, %s67
    %s87 = sphi 0, %s89
    %s90 = sphi 0, %s87
    %s91 = sphi 0, %s90
    %s107 = sphi 0, %s91
  $region4: #{cnn_block_forward.1} parent=0 // loop_header_branch
    %12 = sbr.rel (%p10) target = $region8
  $region5: #{cnn_block_forward.1} parent=0 // loop_body
    %s14 = ssub.s32 %s9, 1
    %s15 = ssub.s32 %s9, 2
    %s16 = sadd.s32 %s9, 1
    %s17 = ssub.s32 %s9, %s16
    %p18 = scmp.eq.s32.totalorder %s17, 0
    %s20 = sadd.s32 %s19, 1
    %s21 = scalar_select %p18, %s19, %s20
    %p24 = pneg %p18
    %p25 = scmp.eq.s32.totalorder %s9, 1
    %p26 = por %p24, %p25
    %p27 = scmp.ne.s32.totalorder %s19, %s22
    %p28 = scmp.eq.s32.totalorder %s9, 0
    %p29 = por %p27, %p28
    %p30 = scmp.ne.s32.totalorder %s19, %s22
    %p31 = scmp.eq.s32.totalorder %s14, 1
    %p32 = por %p30, %p31
    %p33 = scmp.ne.s32.totalorder %s22, %s23
    %p34 = scmp.eq.s32.totalorder %s14, 0
    %p35 = por %p33, %p34
    %p36 = scmp.ne.s32.totalorder %s22, %s23
    %p37 = scmp.eq.s32.totalorder %s15, 1
    %p38 = por %p36, %p37
    %p40 = scmp.ne.s32.totalorder %s23, %s39
    %p41 = scmp.eq.s32.totalorder %s15, 0
    %p42 = por %p40, %p41
    %s44 = sadd.s32 %s43, 1
    %p47 = scmp.eq.s32.totalorder %s9, 1
    %p48 = scmp.ne.s32.totalorder %s43, %s45
    %p49 = scmp.eq.s32.totalorder %s9, 0
    %p50 = por %p48, %p49
    %p51 = scmp.ne.s32.totalorder %s43, %s45
    %p52 = scmp.eq.s32.totalorder %s14, 1
    %p53 = por %p51, %p52
    %p54 = scmp.ne.s32.totalorder %s45, %s46
    %p55 = scmp.eq.s32.totalorder %s14, 0
    %p56 = por %p54, %p55
    %p57 = scmp.ne.s32.totalorder %s45, %s46
    %p58 = scmp.eq.s32.totalorder %s15, 1
    %p59 = por %p57, %p58
    %p61 = scmp.ne.s32.totalorder %s46, %s60
    %p62 = scmp.eq.s32.totalorder %s15, 0
    %p63 = por %p61, %p62
    %s65 = sadd.s32 %s64, 1
    %p68 = scmp.eq.s32.totalorder %s9, 1
    %p69 = scmp.ne.s32.totalorder %s64, %s66
    %p70 = scmp.eq.s32.totalorder %s9, 0
    %p71 = por %p69, %p70
    %p72 = scmp.ne.s32.totalorder %s64, %s66
    %p73 = scmp.eq.s32.totalorder %s14, 1
    %p74 = por %p72, %p73
    %p75 = scmp.ne.s32.totalorder %s66, %s67
    %p76 = scmp.eq.s32.totalorder %s14, 0
    %p77 = por %p75, %p76
    %p78 = scmp.ne.s32.totalorder %s66, %s67
    %p79 = scmp.eq.s32.totalorder %s15, 1
    %p80 = por %p78, %p79
    %p82 = scmp.ne.s32.totalorder %s67, %s81
    %p83 = scmp.eq.s32.totalorder %s15, 0
    %p84 = por %p82, %p83
    %s85 = ssub.s32 %s9, %s16
    %p86 = scmp.eq.s32.totalorder %s85, 0
    %s88 = sadd.s32 %s87, 1
    %s89 = scalar_select %p86, %s87, %s88
    %p92 = pneg %p86
    %p93 = scmp.eq.s32.totalorder %s9, 1
    %p94 = por %p92, %p93
    %p95 = scmp.ne.s32.totalorder %s87, %s90
    %p96 = scmp.eq.s32.totalorder %s9, 0
    %p97 = por %p95, %p96
    %p98 = scmp.ne.s32.totalorder %s87, %s90
    %p99 = scmp.eq.s32.totalorder %s14, 1
    %p100 = por %p98, %p99
    %p101 = scmp.ne.s32.totalorder %s90, %s91
    %p102 = scmp.eq.s32.totalorder %s14, 0
    %p103 = por %p101, %p102
    %p104 = scmp.ne.s32.totalorder %s90, %s91
    %p105 = scmp.eq.s32.totalorder %s15, 1
    %p106 = por %p104, %p105
    %p108 = scmp.ne.s32.totalorder %s91, %s107
    %p109 = scmp.eq.s32.totalorder %s15, 0
    %p110 = por %p108, %p109
    %p111 = scmp.le.s32.totalorder 1, %s9
    %p112 = scmp.lt.s32.totalorder %s9, 3
    %p113 = pnand %p111, %p112
    %p114 = pneg %p113
    // Predicated region
    $region9: #{cnn_block_forward.1} parent=5 // pred_check
      _
    $region10: #{cnn_block_forward.1} parent=5 // pred_check_branch
      %116 = sbr.rel (%p113) target = $region12
    $region11: #{cnn_block_forward.1} parent=5 // pred_region
      %s117 = ssub.s32 %s9, 1
      // Predicated region
      $region13: #{cnn_block_forward.1} parent=11 // pred_check
        %p118 = pneg %p56
      $region14: #{cnn_block_forward.1} parent=11 // pred_check_branch
        %120 = sbr.rel (%p118) target = $region16
      $region15: #{cnn_block_forward.1} parent=11 // pred_region
        _
      $region16: #{cnn_block_forward.1} parent=11 // pred_fallthru
        _
      // Predicated region
      $region17: #{cnn_block_forward.1} parent=11 // pred_check
        %p121 = pneg %p77
      $region18: #{cnn_block_forward.1} parent=11 // pred_check_branch
        %123 = sbr.rel (%p121) target = $region20
      $region19: #{cnn_block_forward.1} parent=11 // pred_region
        _
      $region20: #{cnn_block_forward.1} parent=11 // pred_fallthru
        _
    $region12: #{cnn_block_forward.1} parent=5 // pred_fallthru
      _
    %p124 = scmp.lt.s32.totalorder %s9, 2
    // Predicated region
    $region21: #{cnn_block_forward.1} parent=5 // pred_check
      %p125 = pneg %p124
    $region22: #{cnn_block_forward.1} parent=5 // pred_check_branch
      %127 = sbr.rel (%p125) target = $region24
    $region23: #{cnn_block_forward.1} parent=5 // pred_region
      // Predicated region
      $region25: #{cnn_block_forward.1} parent=23 // pred_check
        %p128 = pneg %p29
      $region26: #{cnn_block_forward.1} parent=23 // pred_check_branch
        %130 = sbr.rel (%p128) target = $region28
      $region27: #{cnn_block_forward.1} parent=23 // pred_region
        %p131 = scmp.lt.s32.totalorder %s9, 1
        %s132 = scalar_select %p131, %s9, 1
        %s133 = smul.addr %s132, 32
        %s134 = smul.addr %s133, 4
        %s135 = scalar_lea.vmem %s0, %s134
      $region28: #{cnn_block_forward.1} parent=23 // pred_fallthru
        _
    $region24: #{cnn_block_forward.1} parent=5 // pred_fallthru
      _
    %p136 = scmp.le.s32.totalorder 1, %s9
    %p137 = scmp.lt.s32.totalorder %s9, 3
    %p138 = pnand %p136, %p137
    %p139 = pneg %p138
    // Predicated region
    $region29: #{cnn_block_forward.1} parent=5 // pred_check
      _
    $region30: #{cnn_block_forward.1} parent=5 // pred_check_branch
      %141 = sbr.rel (%p138) target = $region32
    $region31: #{cnn_block_forward.1} parent=5 // pred_region
      %s142 = ssub.s32 %s9, 1
      %p143 = scmp.lt.s32.totalorder %s14, 1
      %s144 = scalar_select %p143, %s14, 1
      %s145 = smul.addr %s144, 32
      %s146 = smul.addr %s145, 4
      %s147 = scalar_lea.vmem %s0, %s146
      %p148 = pneg %p35
      %p149 = pneg %p32
      %p150 = pneg %p56
      %p151 = pneg %p53
      %p152 = pneg %p77
      %p153 = pneg %p74
      %p154 = pneg %p103
      %p155 = pneg %p100
      %p156 = scmp.lt.s32.totalorder %s14, 1
      %s157 = scalar_select %p156, %s14, 1
      %s158 = smul.addr %s157, 2
      %s159 = smul.addr %s158, 8
      %s160 = scalar_lea.vmem %s3, %s159
      %p161 = scmp.lt.s32.totalorder %s14, 1
      %s162 = scalar_select %p161, %s14, 1
      %s163 = smul.addr %s162, 32
      %s164 = smul.addr %s163, 4
      %s165 = scalar_lea.vmem %s0, %s164
      %p166 = scmp.lt.s32.totalorder %s14, 1
      %s167 = scalar_select %p166, %s14, 1
      %s168 = smul.addr %s167, 2
      %s169 = smul.addr %s168, 8
      %s170 = scalar_lea.vmem %s3, %s169
      %vm172 = vcmask 27648
      %173 = vst.msk [vmem:[#allocation2] sm:$0xf] %vm172, 0
      %174 = vst.msk [vmem:[#allocation2 + $0x4] sm:$0xf] %vm172, 0
      %vm175 = vcmask 24576
      %176 = vst.msk [vmem:[#allocation2 + $0x8] sm:$0x1] %vm175, 0
      %s177 = scalar_lea.vmem [#allocation2], 204
      %178 = vst.msk [vmem:[%s177] sm:$0xf] %vm172, 0
      %179 = vst.msk [vmem:[%s177 + $0x4] sm:$0xf] %vm172, 0
      %180 = vst.msk [vmem:[%s177 + $0x8] sm:$0x1] %vm175, 0
      %s181 = scalar_lea.vmem [#allocation2], 12
      %vm182 = vcmask 24576
      %vm183 = vsmask.f32 256
      %vm184 = vmand %vm182, %vm183
      %v185 = vld [vmem:[%s181] sm:$0x1]
      %v186 = vsel %vm184, 0, %v185
      %187 = vst [vmem:[%s181] sm:$0x1] %v186
      %v188 = vld [vmem:[%s181 + $0xc] sm:$0x1]
      %v189 = vsel %vm184, 0, %v188
      %190 = vst [vmem:[%s181 + $0xc] sm:$0x1] %v189
      %v191 = vld [vmem:[%s181 + $0x18] sm:$0x1]
      %v192 = vsel %vm184, 0, %v191
      %193 = vst [vmem:[%s181 + $0x18] sm:$0x1] %v192
      %v194 = vld [vmem:[%s181 + $0x24] sm:$0x1]
      %v195 = vsel %vm184, 0, %v194
      %196 = vst [vmem:[%s181 + $0x24] sm:$0x1] %v195
      %v197 = vld [vmem:[%s181 + $0x30] sm:$0x1]
      %v198 = vsel %vm184, 0, %v197
      %199 = vst [vmem:[%s181 + $0x30] sm:$0x1] %v198
      %v200 = vld [vmem:[%s181 + $0x3c] sm:$0x1]
      %v201 = vsel %vm184, 0, %v200
      %202 = vst [vmem:[%s181 + $0x3c] sm:$0x1] %v201
      %v203 = vld [vmem:[%s181 + $0x48] sm:$0x1]
      %v204 = vsel %vm184, 0, %v203
      %205 = vst [vmem:[%s181 + $0x48] sm:$0x1] %v204
      %v206 = vld [vmem:[%s181 + $0x54] sm:$0x1]
      %v207 = vsel %vm184, 0, %v206
      %208 = vst [vmem:[%s181 + $0x54] sm:$0x1] %v207
      %v209 = vld [vmem:[%s181 + $0x60] sm:$0x1]
      %v210 = vsel %vm184, 0, %v209
      %211 = vst [vmem:[%s181 + $0x60] sm:$0x1] %v210
      %v212 = vld [vmem:[%s181 + $0x6c] sm:$0x1]
      %v213 = vsel %vm184, 0, %v212
      %214 = vst [vmem:[%s181 + $0x6c] sm:$0x1] %v213
      %v215 = vld [vmem:[%s181 + $0x78] sm:$0x1]
      %v216 = vsel %vm184, 0, %v215
      %217 = vst [vmem:[%s181 + $0x78] sm:$0x1] %v216
      %v218 = vld [vmem:[%s181 + $0x84] sm:$0x1]
      %v219 = vsel %vm184, 0, %v218
      %220 = vst [vmem:[%s181 + $0x84] sm:$0x1] %v219
      %v221 = vld [vmem:[%s181 + $0x90] sm:$0x1]
      %v222 = vsel %vm184, 0, %v221
      %223 = vst [vmem:[%s181 + $0x90] sm:$0x1] %v222
      %v224 = vld [vmem:[%s181 + $0x9c] sm:$0x1]
      %v225 = vsel %vm184, 0, %v224
      %226 = vst [vmem:[%s181 + $0x9c] sm:$0x1] %v225
      %v227 = vld [vmem:[%s181 + $0xa8] sm:$0x1]
      %v228 = vsel %vm184, 0, %v227
      %229 = vst [vmem:[%s181 + $0xa8] sm:$0x1] %v228
      %v230 = vld [vmem:[%s181 + $0xb4] sm:$0x1]
      %v231 = vsel %vm184, 0, %v230
      %232 = vst [vmem:[%s181 + $0xb4] sm:$0x1] %v231
      %vm233 = vsmask.f32 7938
      %vm234 = vmand %vm182, %vm233
      %v235 = vld [vmem:[%s181 + $0x8] sm:$0x1]
      %v236 = vsel %vm234, 0, %v235
      %237 = vst [vmem:[%s181 + $0x8] sm:$0x1] %v236
      %v238 = vld [vmem:[%s181 + $0x14] sm:$0x1]
      %v239 = vsel %vm234, 0, %v238
      %240 = vst [vmem:[%s181 + $0x14] sm:$0x1] %v239
      %v241 = vld [vmem:[%s181 + $0x20] sm:$0x1]
      %v242 = vsel %vm234, 0, %v241
      %243 = vst [vmem:[%s181 + $0x20] sm:$0x1] %v242
      %v244 = vld [vmem:[%s181 + $0x2c] sm:$0x1]
      %v245 = vsel %vm234, 0, %v244
      %246 = vst [vmem:[%s181 + $0x2c] sm:$0x1] %v245
      %v247 = vld [vmem:[%s181 + $0x38] sm:$0x1]
      %v248 = vsel %vm234, 0, %v247
      %249 = vst [vmem:[%s181 + $0x38] sm:$0x1] %v248
      %v250 = vld [vmem:[%s181 + $0x44] sm:$0x1]
      %v251 = vsel %vm234, 0, %v250
      %252 = vst [vmem:[%s181 + $0x44] sm:$0x1] %v251
      %v253 = vld [vmem:[%s181 + $0x50] sm:$0x1]
      %v254 = vsel %vm234, 0, %v253
      %255 = vst [vmem:[%s181 + $0x50] sm:$0x1] %v254
      %v256 = vld [vmem:[%s181 + $0x5c] sm:$0x1]
      %v257 = vsel %vm234, 0, %v256
      %258 = vst [vmem:[%s181 + $0x5c] sm:$0x1] %v257
      %v259 = vld [vmem:[%s181 + $0x68] sm:$0x1]
      %v260 = vsel %vm234, 0, %v259
      %261 = vst [vmem:[%s181 + $0x68] sm:$0x1] %v260
      %v262 = vld [vmem:[%s181 + $0x74] sm:$0x1]
      %v263 = vsel %vm234, 0, %v262
      %264 = vst [vmem:[%s181 + $0x74] sm:$0x1] %v263
      %v265 = vld [vmem:[%s181 + $0x80] sm:$0x1]
      %v266 = vsel %vm234, 0, %v265
      %267 = vst [vmem:[%s181 + $0x80] sm:$0x1] %v266
      %v268 = vld [vmem:[%s181 + $0x8c] sm:$0x1]
      %v269 = vsel %vm234, 0, %v268
      %270 = vst [vmem:[%s181 + $0x8c] sm:$0x1] %v269
      %v271 = vld [vmem:[%s181 + $0x98] sm:$0x1]
      %v272 = vsel %vm234, 0, %v271
      %273 = vst [vmem:[%s181 + $0x98] sm:$0x1] %v272
      %v274 = vld [vmem:[%s181 + $0xa4] sm:$0x1]
      %v275 = vsel %vm234, 0, %v274
      %276 = vst [vmem:[%s181 + $0xa4] sm:$0x1] %v275
      %v277 = vld [vmem:[%s181 + $0xb0] sm:$0x1]
      %v278 = vsel %vm234, 0, %v277
      %279 = vst [vmem:[%s181 + $0xb0] sm:$0x1] %v278
      %v280 = vld [vmem:[%s181 + $0xbc] sm:$0x1]
      %v281 = vsel %vm234, 0, %v280
      %282 = vst [vmem:[%s181 + $0xbc] sm:$0x1] %v281
      %v283 = vld [vmem:[%s165] sm:$0xf]
      %v284 = vld [vmem:[%s165 + $0x4] sm:$0xf]
      %v285 = vld [vmem:[%s165 + $0x8] sm:$0xf]
      %v286 = vld [vmem:[%s165 + $0xc] sm:$0xf]
      %v287 = vld [vmem:[%s165 + $0x10] sm:$0xf]
      %v288 = vld [vmem:[%s165 + $0x14] sm:$0xf]
      %v289 = vld [vmem:[%s165 + $0x18] sm:$0xf]
      %v290 = vld [vmem:[%s165 + $0x1c] sm:$0xf]
      %v291 = vld [vmem:[%s165 + $0x20] sm:$0xf]
      %v292 = vld [vmem:[%s165 + $0x24] sm:$0xf]
      %v293 = vld [vmem:[%s165 + $0x28] sm:$0xf]
      %v294 = vld [vmem:[%s165 + $0x2c] sm:$0xf]
      %v295 = vld [vmem:[%s165 + $0x30] sm:$0xf]
      %v296 = vld [vmem:[%s165 + $0x34] sm:$0xf]
      %v297 = vld [vmem:[%s165 + $0x38] sm:$0xf]
      %v298 = vld [vmem:[%s165 + $0x3c] sm:$0xf]
      %v299 = vld [vmem:[%s165 + $0x40] sm:$0xf]
      %v300 = vld [vmem:[%s165 + $0x44] sm:$0xf]
      %v301 = vld [vmem:[%s165 + $0x48] sm:$0xf]
      %v302 = vld [vmem:[%s165 + $0x4c] sm:$0xf]
      %v303 = vld [vmem:[%s165 + $0x50] sm:$0xf]
      %v304 = vld [vmem:[%s165 + $0x54] sm:$0xf]
      %v305 = vld [vmem:[%s165 + $0x58] sm:$0xf]
      %v306 = vld [vmem:[%s165 + $0x5c] sm:$0xf]
      %v307 = vld [vmem:[%s165 + $0x60] sm:$0xf]
      %v308 = vld [vmem:[%s165 + $0x64] sm:$0xf]
      %v309 = vld [vmem:[%s165 + $0x68] sm:$0xf]
      %v310 = vld [vmem:[%s165 + $0x6c] sm:$0xf]
      %v311 = vld [vmem:[%s165 + $0x70] sm:$0xf]
      %v312 = vld [vmem:[%s165 + $0x74] sm:$0xf]
      %v313 = vld [vmem:[%s165 + $0x78] sm:$0xf]
      %v314 = vld [vmem:[%s165 + $0x7c] sm:$0xf]
      %vm315 = vsmask.f32 4368
      %vm316 = vmor %vm183, %vm315
      %v318 = vshrl.u32 %v283, 16
      %v320 = vrot.slane %v318, 7
      %v321 = vshll.u32 %v283, 16
      %v323 = vor.u32 %v320, %v321
      %v324 = vrot.slane %v320, 4
      %v326 = vshrl.u32 %v284, 16
      %v328 = vrot.slane %v326, 7
      %v329 = vshll.u32 %v284, 16
      %v331 = vor.u32 %v328, %v329
      %v332 = vsel %vm316, %v324, %v331
      %v333 = vrot.slane %v328, 4
      %v335 = vshrl.u32 %v285, 16
      %v337 = vrot.slane %v335, 7
      %v338 = vshll.u32 %v285, 16
      %v340 = vor.u32 %v337, %v338
      %v341 = vrot.slane %v337, 4
      %v343 = vshrl.u32 %v286, 16
      %v345 = vrot.slane %v343, 7
      %v346 = vshll.u32 %v286, 16
      %v348 = vor.u32 %v345, %v346
      %v349 = vsel %vm316, %v341, %v348
      %v350 = vrot.slane %v345, 4
      %v352 = vshrl.u32 %v287, 16
      %v354 = vrot.slane %v352, 7
      %v355 = vshll.u32 %v287, 16
      %v357 = vor.u32 %v354, %v355
      %v358 = vrot.slane %v354, 4
      %v360 = vshrl.u32 %v288, 16
      %v362 = vrot.slane %v360, 7
      %v363 = vshll.u32 %v288, 16
      %v365 = vor.u32 %v362, %v363
      %v366 = vsel %vm316, %v358, %v365
      %v367 = vrot.slane %v362, 4
      %v369 = vshrl.u32 %v289, 16
      %v371 = vrot.slane %v369, 7
      %v372 = vshll.u32 %v289, 16
      %v374 = vor.u32 %v371, %v372
      %v375 = vrot.slane %v371, 4
      %v377 = vshrl.u32 %v290, 16
      %v379 = vrot.slane %v377, 7
      %v380 = vshll.u32 %v290, 16
      %v382 = vor.u32 %v379, %v380
      %v383 = vsel %vm316, %v375, %v382
      %v384 = vrot.slane %v379, 4
      %v386 = vshrl.u32 %v291, 16
      %v388 = vrot.slane %v386, 7
      %v389 = vshll.u32 %v291, 16
      %v391 = vor.u32 %v388, %v389
      %v392 = vrot.slane %v388, 4
      %v394 = vshrl.u32 %v292, 16
      %v396 = vrot.slane %v394, 7
      %v397 = vshll.u32 %v292, 16
      %v399 = vor.u32 %v396, %v397
      %v400 = vsel %vm316, %v392, %v399
      %v401 = vrot.slane %v396, 4
      %v403 = vshrl.u32 %v293, 16
      %v405 = vrot.slane %v403, 7
      %v406 = vshll.u32 %v293, 16
      %v408 = vor.u32 %v405, %v406
      %v409 = vrot.slane %v405, 4
      %v411 = vshrl.u32 %v294, 16
      %v413 = vrot.slane %v411, 7
      %v414 = vshll.u32 %v294, 16
      %v416 = vor.u32 %v413, %v414
      %v417 = vsel %vm316, %v409, %v416
      %v418 = vrot.slane %v413, 4
      %v420 = vshrl.u32 %v295, 16
      %v422 = vrot.slane %v420, 7
      %v423 = vshll.u32 %v295, 16
      %v425 = vor.u32 %v422, %v423
      %v426 = vrot.slane %v422, 4
      %v428 = vshrl.u32 %v296, 16
      %v430 = vrot.slane %v428, 7
      %v431 = vshll.u32 %v296, 16
      %v433 = vor.u32 %v430, %v431
      %v434 = vsel %vm316, %v426, %v433
      %v435 = vrot.slane %v430, 4
      %v437 = vshrl.u32 %v297, 16
      %v439 = vrot.slane %v437, 7
      %v440 = vshll.u32 %v297, 16
      %v442 = vor.u32 %v439, %v440
      %v443 = vrot.slane %v439, 4
      %v445 = vshrl.u32 %v298, 16
      %v447 = vrot.slane %v445, 7
      %v448 = vshll.u32 %v298, 16
      %v450 = vor.u32 %v447, %v448
      %v451 = vsel %vm316, %v443, %v450
      %v452 = vrot.slane %v447, 4
      %v454 = vshrl.u32 %v299, 16
      %v456 = vrot.slane %v454, 7
      %v457 = vshll.u32 %v299, 16
      %v459 = vor.u32 %v456, %v457
      %v460 = vrot.slane %v456, 4
      %v462 = vshrl.u32 %v300, 16
      %v464 = vrot.slane %v462, 7
      %v465 = vshll.u32 %v300, 16
      %v467 = vor.u32 %v464, %v465
      %v468 = vsel %vm316, %v460, %v467
      %v469 = vrot.slane %v464, 4
      %v471 = vshrl.u32 %v301, 16
      %v473 = vrot.slane %v471, 7
      %v474 = vshll.u32 %v301, 16
      %v476 = vor.u32 %v473, %v474
      %v477 = vrot.slane %v473, 4
      %v479 = vshrl.u32 %v302, 16
      %v481 = vrot.slane %v479, 7
      %v482 = vshll.u32 %v302, 16
      %v484 = vor.u32 %v481, %v482
      %v485 = vsel %vm316, %v477, %v484
      %v486 = vrot.slane %v481, 4
      %v488 = vshrl.u32 %v303, 16
      %v490 = vrot.slane %v488, 7
      %v491 = vshll.u32 %v303, 16
      %v493 = vor.u32 %v490, %v491
      %v494 = vrot.slane %v490, 4
      %v496 = vshrl.u32 %v304, 16
      %v498 = vrot.slane %v496, 7
      %v499 = vshll.u32 %v304, 16
      %v501 = vor.u32 %v498, %v499
      %v502 = vsel %vm316, %v494, %v501
      %v503 = vrot.slane %v498, 4
      %v505 = vshrl.u32 %v305, 16
      %v507 = vrot.slane %v505, 7
      %v508 = vshll.u32 %v305, 16
      %v510 = vor.u32 %v507, %v508
      %v511 = vrot.slane %v507, 4
      %v513 = vshrl.u32 %v306, 16
      %v515 = vrot.slane %v513, 7
      %v516 = vshll.u32 %v306, 16
      %v518 = vor.u32 %v515, %v516
      %v519 = vsel %vm316, %v511, %v518
      %v520 = vrot.slane %v515, 4
      %v522 = vshrl.u32 %v307, 16
      %v524 = vrot.slane %v522, 7
      %v525 = vshll.u32 %v307, 16
      %v527 = vor.u32 %v524, %v525
      %v528 = vrot.slane %v524, 4
      %v530 = vshrl.u32 %v308, 16
      %v532 = vrot.slane %v530, 7
      %v533 = vshll.u32 %v308, 16
      %v535 = vor.u32 %v532, %v533
      %v536 = vsel %vm316, %v528, %v535
      %v537 = vrot.slane %v532, 4
      %v539 = vshrl.u32 %v309, 16
      %v541 = vrot.slane %v539, 7
      %v542 = vshll.u32 %v309, 16
      %v544 = vor.u32 %v541, %v542
      %v545 = vrot.slane %v541, 4
      %v547 = vshrl.u32 %v310, 16
      %v549 = vrot.slane %v547, 7
      %v550 = vshll.u32 %v310, 16
      %v552 = vor.u32 %v549, %v550
      %v553 = vsel %vm316, %v545, %v552
      %v554 = vrot.slane %v549, 4
      %v556 = vshrl.u32 %v311, 16
      %v558 = vrot.slane %v556, 7
      %v559 = vshll.u32 %v311, 16
      %v561 = vor.u32 %v558, %v559
      %v562 = vrot.slane %v558, 4
      %v564 = vshrl.u32 %v312, 16
      %v566 = vrot.slane %v564, 7
      %v567 = vshll.u32 %v312, 16
      %v569 = vor.u32 %v566, %v567
      %v570 = vsel %vm316, %v562, %v569
      %v571 = vrot.slane %v566, 4
      %v573 = vshrl.u32 %v313, 16
      %v575 = vrot.slane %v573, 7
      %v576 = vshll.u32 %v313, 16
      %v578 = vor.u32 %v575, %v576
      %v579 = vrot.slane %v575, 4
      %v581 = vshrl.u32 %v314, 16
      %v583 = vrot.slane %v581, 7
      %v584 = vshll.u32 %v314, 16
      %v586 = vor.u32 %v583, %v584
      %v587 = vsel %vm316, %v579, %v586
      %v588 = vrot.slane %v583, 4
      %vm637 = vcmask 27648
      %vm638 = vmand %vm637, %vm233
      %v639 = vld [vmem:[%s181] sm:$0xf]
      %v640 = vsel %vm638, %v323, %v639
      %641 = vst [vmem:[%s181] sm:$0xf] %v640
      %642 = vst.msk [vmem:[%s181 + $0x4] sm:$0xf] %vm172, %v332
      %v643 = vld [vmem:[%s181 + $0x8] sm:$0x1]
      %v644 = vsel %vm184, %v333, %v643
      %645 = vst [vmem:[%s181 + $0x8] sm:$0x1] %v644
      %v646 = vld [vmem:[%s181 + $0xc] sm:$0xf]
      %v647 = vsel %vm638, %v340, %v646
      %648 = vst [vmem:[%s181 + $0xc] sm:$0xf] %v647
      %649 = vst.msk [vmem:[%s181 + $0x10] sm:$0xf] %vm172, %v349
      %v650 = vld [vmem:[%s181 + $0x14] sm:$0x1]
      %v651 = vsel %vm184, %v350, %v650
      %652 = vst [vmem:[%s181 + $0x14] sm:$0x1] %v651
      %v653 = vld [vmem:[%s181 + $0x18] sm:$0xf]
      %v654 = vsel %vm638, %v357, %v653
      %655 = vst [vmem:[%s181 + $0x18] sm:$0xf] %v654
      %656 = vst.msk [vmem:[%s181 + $0x1c] sm:$0xf] %vm172, %v366
      %v657 = vld [vmem:[%s181 + $0x20] sm:$0x1]
      %v658 = vsel %vm184, %v367, %v657
      %659 = vst [vmem:[%s181 + $0x20] sm:$0x1] %v658
      %v660 = vld [vmem:[%s181 + $0x24] sm:$0xf]
      %v661 = vsel %vm638, %v374, %v660
      %662 = vst [vmem:[%s181 + $0x24] sm:$0xf] %v661
      %663 = vst.msk [vmem:[%s181 + $0x28] sm:$0xf] %vm172, %v383
      %v664 = vld [vmem:[%s181 + $0x2c] sm:$0x1]
      %v665 = vsel %vm184, %v384, %v664
      %666 = vst [vmem:[%s181 + $0x2c] sm:$0x1] %v665
      %v667 = vld [vmem:[%s181 + $0x30] sm:$0xf]
      %v668 = vsel %vm638, %v391, %v667
      %669 = vst [vmem:[%s181 + $0x30] sm:$0xf] %v668
      %670 = vst.msk [vmem:[%s181 + $0x34] sm:$0xf] %vm172, %v400
      %v671 = vld [vmem:[%s181 + $0x38] sm:$0x1]
      %v672 = vsel %vm184, %v401, %v671
      %673 = vst [vmem:[%s181 + $0x38] sm:$0x1] %v672
      %v674 = vld [vmem:[%s181 + $0x3c] sm:$0xf]
      %v675 = vsel %vm638, %v408, %v674
      %676 = vst [vmem:[%s181 + $0x3c] sm:$0xf] %v675
      %677 = vst.msk [vmem:[%s181 + $0x40] sm:$0xf] %vm172, %v417
      %v678 = vld [vmem:[%s181 + $0x44] sm:$0x1]
      %v679 = vsel %vm184, %v418, %v678
      %680 = vst [vmem:[%s181 + $0x44] sm:$0x1] %v679
      %v681 = vld [vmem:[%s181 + $0x48] sm:$0xf]
      %v682 = vsel %vm638, %v425, %v681
      %683 = vst [vmem:[%s181 + $0x48] sm:$0xf] %v682
      %684 = vst.msk [vmem:[%s181 + $0x4c] sm:$0xf] %vm172, %v434
      %v685 = vld [vmem:[%s181 + $0x50] sm:$0x1]
      %v686 = vsel %vm184, %v435, %v685
      %687 = vst [vmem:[%s181 + $0x50] sm:$0x1] %v686
      %v688 = vld [vmem:[%s181 + $0x54] sm:$0xf]
      %v689 = vsel %vm638, %v442, %v688
      %690 = vst [vmem:[%s181 + $0x54] sm:$0xf] %v689
      %691 = vst.msk [vmem:[%s181 + $0x58] sm:$0xf] %vm172, %v451
      %v692 = vld [vmem:[%s181 + $0x5c] sm:$0x1]
      %v693 = vsel %vm184, %v452, %v692
      %694 = vst [vmem:[%s181 + $0x5c] sm:$0x1] %v693
      %v695 = vld [vmem:[%s181 + $0x60] sm:$0xf]
      %v696 = vsel %vm638, %v459, %v695
      %697 = vst [vmem:[%s181 + $0x60] sm:$0xf] %v696
      %698 = vst.msk [vmem:[%s181 + $0x64] sm:$0xf] %vm172, %v468
      %v699 = vld [vmem:[%s181 + $0x68] sm:$0x1]
      %v700 = vsel %vm184, %v469, %v699
      %701 = vst [vmem:[%s181 + $0x68] sm:$0x1] %v700
      %v702 = vld [vmem:[%s181 + $0x6c] sm:$0xf]
      %v703 = vsel %vm638, %v476, %v702
      %704 = vst [vmem:[%s181 + $0x6c] sm:$0xf] %v703
      %705 = vst.msk [vmem:[%s181 + $0x70] sm:$0xf] %vm172, %v485
      %v706 = vld [vmem:[%s181 + $0x74] sm:$0x1]
      %v707 = vsel %vm184, %v486, %v706
      %708 = vst [vmem:[%s181 + $0x74] sm:$0x1] %v707
      %v709 = vld [vmem:[%s181 + $0x78] sm:$0xf]
      %v710 = vsel %vm638, %v493, %v709
      %711 = vst [vmem:[%s181 + $0x78] sm:$0xf] %v710
      %712 = vst.msk [vmem:[%s181 + $0x7c] sm:$0xf] %vm172, %v502
      %v713 = vld [vmem:[%s181 + $0x80] sm:$0x1]
      %v714 = vsel %vm184, %v503, %v713
      %715 = vst [vmem:[%s181 + $0x80] sm:$0x1] %v714
      %v716 = vld [vmem:[%s181 + $0x84] sm:$0xf]
      %v717 = vsel %vm638, %v510, %v716
      %718 = vst [vmem:[%s181 + $0x84] sm:$0xf] %v717
      %719 = vst.msk [vmem:[%s181 + $0x88] sm:$0xf] %vm172, %v519
      %v720 = vld [vmem:[%s181 + $0x8c] sm:$0x1]
      %v721 = vsel %vm184, %v520, %v720
      %722 = vst [vmem:[%s181 + $0x8c] sm:$0x1] %v721
      %v723 = vld [vmem:[%s181 + $0x90] sm:$0xf]
      %v724 = vsel %vm638, %v527, %v723
      %725 = vst [vmem:[%s181 + $0x90] sm:$0xf] %v724
      %726 = vst.msk [vmem:[%s181 + $0x94] sm:$0xf] %vm172, %v536
      %v727 = vld [vmem:[%s181 + $0x98] sm:$0x1]
      %v728 = vsel %vm184, %v537, %v727
      %729 = vst [vmem:[%s181 + $0x98] sm:$0x1] %v728
      %v730 = vld [vmem:[%s181 + $0x9c] sm:$0xf]
      %v731 = vsel %vm638, %v544, %v730
      %732 = vst [vmem:[%s181 + $0x9c] sm:$0xf] %v731
      %733 = vst.msk [vmem:[%s181 + $0xa0] sm:$0xf] %vm172, %v553
      %v734 = vld [vmem:[%s181 + $0xa4] sm:$0x1]
      %v735 = vsel %vm184, %v554, %v734
      %736 = vst [vmem:[%s181 + $0xa4] sm:$0x1] %v735
      %v737 = vld [vmem:[%s181 + $0xa8] sm:$0xf]
      %v738 = vsel %vm638, %v561, %v737
      %739 = vst [vmem:[%s181 + $0xa8] sm:$0xf] %v738
      %740 = vst.msk [vmem:[%s181 + $0xac] sm:$0xf] %vm172, %v570
      %v741 = vld [vmem:[%s181 + $0xb0] sm:$0x1]
      %v742 = vsel %vm184, %v571, %v741
      %743 = vst [vmem:[%s181 + $0xb0] sm:$0x1] %v742
      %v744 = vld [vmem:[%s181 + $0xb4] sm:$0xf]
      %v745 = vsel %vm638, %v578, %v744
      %746 = vst [vmem:[%s181 + $0xb4] sm:$0xf] %v745
      %747 = vst.msk [vmem:[%s181 + $0xb8] sm:$0xf] %vm172, %v587
      %v748 = vld [vmem:[%s181 + $0xbc] sm:$0x1]
      %v749 = vsel %vm184, %v588, %v748
      %750 = vst [vmem:[%s181 + $0xbc] sm:$0x1] %v749
      %v751 = vld [vmem:[#allocation2] sm:$0xf]
      %v752 = vld [vmem:[#allocation2 + $0x4] sm:$0xf]
      %v753 = vld [vmem:[#allocation2 + $0x8] sm:$0x1]
      %v754 = vld [vmem:[#allocation2 + $0xc] sm:$0xf]
      %v755 = vld [vmem:[#allocation2 + $0x10] sm:$0xf]
      %v756 = vld [vmem:[#allocation2 + $0x14] sm:$0x1]
      %v757 = vld [vmem:[#allocation2 + $0x18] sm:$0xf]
      %v758 = vld [vmem:[#allocation2 + $0x1c] sm:$0xf]
      %v759 = vld [vmem:[#allocation2 + $0x20] sm:$0x1]
      %v760 = vld [vmem:[#allocation2 + $0x24] sm:$0xf]
      %v761 = vld [vmem:[#allocation2 + $0x28] sm:$0xf]
      %v762 = vld [vmem:[#allocation2 + $0x2c] sm:$0x1]
      %v763 = vld [vmem:[#allocation2 + $0x30] sm:$0xf]
      %v764 = vld [vmem:[#allocation2 + $0x34] sm:$0xf]
      %v765 = vld [vmem:[#allocation2 + $0x38] sm:$0x1]
      %v766 = vld [vmem:[#allocation2 + $0x3c] sm:$0xf]
      %v767 = vld [vmem:[#allocation2 + $0x40] sm:$0xf]
      %v768 = vld [vmem:[#allocation2 + $0x44] sm:$0x1]
      %v769 = vld [vmem:[#allocation2 + $0x48] sm:$0xf]
      %v770 = vld [vmem:[#allocation2 + $0x4c] sm:$0xf]
      %v771 = vld [vmem:[#allocation2 + $0x50] sm:$0x1]
      %v772 = vld [vmem:[#allocation2 + $0x54] sm:$0xf]
      %v773 = vld [vmem:[#allocation2 + $0x58] sm:$0xf]
      %v774 = vld [vmem:[#allocation2 + $0x5c] sm:$0x1]
      %v775 = vld [vmem:[#allocation2 + $0x60] sm:$0xf]
      %v776 = vld [vmem:[#allocation2 + $0x64] sm:$0xf]
      %v777 = vld [vmem:[#allocation2 + $0x68] sm:$0x1]
      %v778 = vld [vmem:[#allocation2 + $0x6c] sm:$0xf]
      %v779 = vld [vmem:[#allocation2 + $0x70] sm:$0xf]
      %v780 = vld [vmem:[#allocation2 + $0x74] sm:$0x1]
      %v781 = vld [vmem:[#allocation2 + $0x78] sm:$0xf]
      %v782 = vld [vmem:[#allocation2 + $0x7c] sm:$0xf]
      %v783 = vld [vmem:[#allocation2 + $0x80] sm:$0x1]
      %v784 = vld [vmem:[#allocation2 + $0x84] sm:$0xf]
      %v785 = vld [vmem:[#allocation2 + $0x88] sm:$0xf]
      %v786 = vld [vmem:[#allocation2 + $0x8c] sm:$0x1]
      %v787 = vld [vmem:[#allocation2 + $0x90] sm:$0xf]
      %v788 = vld [vmem:[#allocation2 + $0x94] sm:$0xf]
      %v789 = vld [vmem:[#allocation2 + $0x98] sm:$0x1]
      %v790 = vld [vmem:[#allocation2 + $0x9c] sm:$0xf]
      %v791 = vld [vmem:[#allocation2 + $0xa0] sm:$0xf]
      %v792 = vld [vmem:[#allocation2 + $0xa4] sm:$0x1]
      %v793 = vld [vmem:[#allocation2 + $0xa8] sm:$0xf]
      %v794 = vld [vmem:[#allocation2 + $0xac] sm:$0xf]
      %v795 = vld [vmem:[#allocation2 + $0xb0] sm:$0x1]
      %v796 = vld [vmem:[#allocation2 + $0xb4] sm:$0xf]
      %v797 = vld [vmem:[#allocation2 + $0xb8] sm:$0xf]
      %v798 = vld [vmem:[#allocation2 + $0xbc] sm:$0x1]
      %v799 = vld [vmem:[#allocation2 + $0xc0] sm:$0xf]
      %v800 = vld [vmem:[#allocation2 + $0xc4] sm:$0xf]
      %v801 = vld [vmem:[#allocation2 + $0xc8] sm:$0x1]
      %v802 = vld [vmem:[#allocation2 + $0xcc] sm:$0xf]
      %v803 = vld [vmem:[#allocation2 + $0xd0] sm:$0xf]
      %v804 = vld [vmem:[#allocation2 + $0xd4] sm:$0x1]
      %v837 = vunpack.c.l.b16 %v751
      %v838 = vunpack.c.l.b16 %v752
      %v839 = vunpack.c.l.b16 %v754
      %v840 = vunpack.c.l.b16 %v755
      %v841 = vunpack.c.l.b16 %v757
      %v842 = vunpack.c.l.b16 %v758
      %v843 = vunpack.c.l.b16 %v760
      %v844 = vunpack.c.l.b16 %v761
      %v845 = vunpack.c.l.b16 %v763
      %v846 = vunpack.c.l.b16 %v764
      %v847 = vunpack.c.l.b16 %v766
      %v848 = vunpack.c.l.b16 %v767
      %v849 = vunpack.c.l.b16 %v769
      %v850 = vunpack.c.l.b16 %v770
      %v851 = vunpack.c.l.b16 %v772
      %v852 = vunpack.c.l.b16 %v773
      %v853 = vunpack.c.l.b16 %v775
      %v854 = vunpack.c.l.b16 %v776
      %v855 = vunpack.c.l.b16 %v778
      %v856 = vunpack.c.l.b16 %v779
      %v857 = vunpack.c.l.b16 %v781
      %v858 = vunpack.c.l.b16 %v782
      %v859 = vunpack.c.l.b16 %v784
      %v860 = vunpack.c.l.b16 %v785
      %v861 = vunpack.c.l.b16 %v787
      %v862 = vunpack.c.l.b16 %v788
      %v863 = vunpack.c.l.b16 %v790
      %v864 = vunpack.c.l.b16 %v791
      %v865 = vunpack.c.l.b16 %v793
      %v866 = vunpack.c.l.b16 %v794
      %v867 = vunpack.c.l.b16 %v796
      %v868 = vunpack.c.l.b16 %v797
      %v869 = vpack.c.b16 %v838, %v837
      %v870 = vpack.c.b16 %v840, %v839
      %v871 = vpack.c.b16 %v842, %v841
      %v872 = vpack.c.b16 %v844, %v843
      %v873 = vpack.c.b16 %v846, %v845
      %v874 = vpack.c.b16 %v848, %v847
      %v875 = vpack.c.b16 %v850, %v849
      %v876 = vpack.c.b16 %v852, %v851
      %v877 = vpack.c.b16 %v854, %v853
      %v878 = vpack.c.b16 %v856, %v855
      %v879 = vpack.c.b16 %v858, %v857
      %v880 = vpack.c.b16 %v860, %v859
      %v881 = vpack.c.b16 %v862, %v861
      %v882 = vpack.c.b16 %v864, %v863
      %v883 = vpack.c.b16 %v866, %v865
      %v884 = vpack.c.b16 %v868, %v867
      %v901 = vunpack.c.l.b16 %v753
      %v902 = vunpack.c.l.b16 %v756
      %v903 = vunpack.c.l.b16 %v759
      %v904 = vunpack.c.l.b16 %v762
      %v905 = vunpack.c.l.b16 %v765
      %v906 = vunpack.c.l.b16 %v768
      %v907 = vunpack.c.l.b16 %v771
      %v908 = vunpack.c.l.b16 %v774
      %v909 = vunpack.c.l.b16 %v777
      %v910 = vunpack.c.l.b16 %v780
      %v911 = vunpack.c.l.b16 %v783
      %v912 = vunpack.c.l.b16 %v786
      %v913 = vunpack.c.l.b16 %v789
      %v914 = vunpack.c.l.b16 %v792
      %v915 = vunpack.c.l.b16 %v795
      %v916 = vunpack.c.l.b16 %v798
      %v917 = vpack.c.b16 %v901, %v901
      %v918 = vpack.c.b16 %v902, %v902
      %v919 = vpack.c.b16 %v903, %v903
      %v920 = vpack.c.b16 %v904, %v904
      %v921 = vpack.c.b16 %v905, %v905
      %v922 = vpack.c.b16 %v906, %v906
      %v923 = vpack.c.b16 %v907, %v907
      %v924 = vpack.c.b16 %v908, %v908
      %v925 = vpack.c.b16 %v909, %v909
      %v926 = vpack.c.b16 %v910, %v910
      %v927 = vpack.c.b16 %v911, %v911
      %v928 = vpack.c.b16 %v912, %v912
      %v929 = vpack.c.b16 %v913, %v913
      %v930 = vpack.c.b16 %v914, %v914
      %v931 = vpack.c.b16 %v915, %v915
      %v932 = vpack.c.b16 %v916, %v916
      %vm933 = vsmask.f32 7424
      %v935 = vshrl.u32 %v869, 16
      %v937 = vshll.u32 %v869, 16
      %v939 = vrot.slane %v937, 1
      %v940 = vor.u32 %v935, %v939
      %v942 = vshll.u32 %v917, 16
      %v944 = vrot.slane %v942, 1
      %v945 = vsel %vm933, %v940, %v944
      %v947 = vshrl.u32 %v870, 16
      %v949 = vshll.u32 %v870, 16
      %v951 = vrot.slane %v949, 1
      %v952 = vor.u32 %v947, %v951
      %v954 = vshll.u32 %v918, 16
      %v956 = vrot.slane %v954, 1
      %v957 = vsel %vm933, %v952, %v956
      %v959 = vshrl.u32 %v871, 16
      %v961 = vshll.u32 %v871, 16
      %v963 = vrot.slane %v961, 1
      %v964 = vor.u32 %v959, %v963
      %v966 = vshll.u32 %v919, 16
      %v968 = vrot.slane %v966, 1
      %v969 = vsel %vm933, %v964, %v968
      %v971 = vshrl.u32 %v872, 16
      %v973 = vshll.u32 %v872, 16
      %v975 = vrot.slane %v973, 1
      %v976 = vor.u32 %v971, %v975
      %v978 = vshll.u32 %v920, 16
      %v980 = vrot.slane %v978, 1
      %v981 = vsel %vm933, %v976, %v980
      %v983 = vshrl.u32 %v873, 16
      %v985 = vshll.u32 %v873, 16
      %v987 = vrot.slane %v985, 1
      %v988 = vor.u32 %v983, %v987
      %v990 = vshll.u32 %v921, 16
      %v992 = vrot.slane %v990, 1
      %v993 = vsel %vm933, %v988, %v992
      %v995 = vshrl.u32 %v874, 16
      %v997 = vshll.u32 %v874, 16
      %v999 = vrot.slane %v997, 1
      %v1000 = vor.u32 %v995, %v999
      %v1002 = vshll.u32 %v922, 16
      %v1004 = vrot.slane %v1002, 1
      %v1005 = vsel %vm933, %v1000, %v1004
      %v1007 = vshrl.u32 %v875, 16
      %v1009 = vshll.u32 %v875, 16
      %v1011 = vrot.slane %v1009, 1
      %v1012 = vor.u32 %v1007, %v1011
      %v1014 = vshll.u32 %v923, 16
      %v1016 = vrot.slane %v1014, 1
      %v1017 = vsel %vm933, %v1012, %v1016
      %v1019 = vshrl.u32 %v876, 16
      %v1021 = vshll.u32 %v876, 16
      %v1023 = vrot.slane %v1021, 1
      %v1024 = vor.u32 %v1019, %v1023
      %v1026 = vshll.u32 %v924, 16
      %v1028 = vrot.slane %v1026, 1
      %v1029 = vsel %vm933, %v1024, %v1028
      %v1031 = vshrl.u32 %v877, 16
      %v1033 = vshll.u32 %v877, 16
      %v1035 = vrot.slane %v1033, 1
      %v1036 = vor.u32 %v1031, %v1035
      %v1038 = vshll.u32 %v925, 16
      %v1040 = vrot.slane %v1038, 1
      %v1041 = vsel %vm933, %v1036, %v1040
      %v1043 = vshrl.u32 %v878, 16
      %v1045 = vshll.u32 %v878, 16
      %v1047 = vrot.slane %v1045, 1
      %v1048 = vor.u32 %v1043, %v1047
      %v1050 = vshll.u32 %v926, 16
      %v1052 = vrot.slane %v1050, 1
      %v1053 = vsel %vm933, %v1048, %v1052
      %v1055 = vshrl.u32 %v879, 16
      %v1057 = vshll.u32 %v879, 16
      %v1059 = vrot.slane %v1057, 1
      %v1060 = vor.u32 %v1055, %v1059
      %v1062 = vshll.u32 %v927, 16
      %v1064 = vrot.slane %v1062, 1
      %v1065 = vsel %vm933, %v1060, %v1064
      %v1067 = vshrl.u32 %v880, 16
      %v1069 = vshll.u32 %v880, 16
      %v1071 = vrot.slane %v1069, 1
      %v1072 = vor.u32 %v1067, %v1071
      %v1074 = vshll.u32 %v928, 16
      %v1076 = vrot.slane %v1074, 1
      %v1077 = vsel %vm933, %v1072, %v1076
      %v1079 = vshrl.u32 %v881, 16
      %v1081 = vshll.u32 %v881, 16
      %v1083 = vrot.slane %v1081, 1
      %v1084 = vor.u32 %v1079, %v1083
      %v1086 = vshll.u32 %v929, 16
      %v1088 = vrot.slane %v1086, 1
      %v1089 = vsel %vm933, %v1084, %v1088
      %v1091 = vshrl.u32 %v882, 16
      %v1093 = vshll.u32 %v882, 16
      %v1095 = vrot.slane %v1093, 1
      %v1096 = vor.u32 %v1091, %v1095
      %v1098 = vshll.u32 %v930, 16
      %v1100 = vrot.slane %v1098, 1
      %v1101 = vsel %vm933, %v1096, %v1100
      %v1103 = vshrl.u32 %v883, 16
      %v1105 = vshll.u32 %v883, 16
      %v1107 = vrot.slane %v1105, 1
      %v1108 = vor.u32 %v1103, %v1107
      %v1110 = vshll.u32 %v931, 16
      %v1112 = vrot.slane %v1110, 1
      %v1113 = vsel %vm933, %v1108, %v1112
      %v1115 = vshrl.u32 %v884, 16
      %v1117 = vshll.u32 %v884, 16
      %v1119 = vrot.slane %v1117, 1
      %v1120 = vor.u32 %v1115, %v1119
      %v1122 = vshll.u32 %v932, 16
      %v1124 = vrot.slane %v1122, 1
      %v1125 = vsel %vm933, %v1120, %v1124
      %1126 = vrot.lane.b32.xlu0 %v945, 4
      %v1127 = vpop.permute.xlu0 %1126
      %1128 = vrot.lane.b32.xlu0 %v957, 4
      %v1129 = vpop.permute.xlu0 %1128
      %1130 = vrot.lane.b32.xlu0 %v969, 4
      %v1131 = vpop.permute.xlu0 %1130
      %1132 = vrot.lane.b32.xlu0 %v981, 4
      %v1133 = vpop.permute.xlu0 %1132
      %1134 = vrot.lane.b32.xlu0 %v993, 4
      %v1135 = vpop.permute.xlu0 %1134
      %1136 = vrot.lane.b32.xlu0 %v1005, 4
      %v1137 = vpop.permute.xlu0 %1136
      %1138 = vrot.lane.b32.xlu0 %v1017, 4
      %v1139 = vpop.permute.xlu0 %1138
      %1140 = vrot.lane.b32.xlu0 %v1029, 4
      %v1141 = vpop.permute.xlu0 %1140
      %1142 = vrot.lane.b32.xlu0 %v1041, 4
      %v1143 = vpop.permute.xlu0 %1142
      %1144 = vrot.lane.b32.xlu0 %v1053, 4
      %v1145 = vpop.permute.xlu0 %1144
      %1146 = vrot.lane.b32.xlu0 %v1065, 4
      %v1147 = vpop.permute.xlu0 %1146
      %1148 = vrot.lane.b32.xlu0 %v1077, 4
      %v1149 = vpop.permute.xlu0 %1148
      %1150 = vrot.lane.b32.xlu0 %v1089, 4
      %v1151 = vpop.permute.xlu0 %1150
      %1152 = vrot.lane.b32.xlu0 %v1101, 4
      %v1153 = vpop.permute.xlu0 %1152
      %1154 = vrot.lane.b32.xlu0 %v1113, 4
      %v1155 = vpop.permute.xlu0 %1154
      %1156 = vrot.lane.b32.xlu0 %v1125, 4
      %v1157 = vpop.permute.xlu0 %1156
      %vm1158 = vcmask 1046528
      %v1159 = vrot.slane %v869, 1
      %v1160 = vrot.slane %v917, 1
      %v1161 = vsel %vm1158, %v1159, %v1160
      %v1162 = vrot.slane %v870, 1
      %v1163 = vrot.slane %v918, 1
      %v1164 = vsel %vm1158, %v1162, %v1163
      %v1165 = vrot.slane %v871, 1
      %v1166 = vrot.slane %v919, 1
      %v1167 = vsel %vm1158, %v1165, %v1166
      %v1168 = vrot.slane %v872, 1
      %v1169 = vrot.slane %v920, 1
      %v1170 = vsel %vm1158, %v1168, %v1169
      %v1171 = vrot.slane %v873, 1
      %v1172 = vrot.slane %v921, 1
      %v1173 = vsel %vm1158, %v1171, %v1172
      %v1174 = vrot.slane %v874, 1
      %v1175 = vrot.slane %v922, 1
      %v1176 = vsel %vm1158, %v1174, %v1175
      %v1177 = vrot.slane %v875, 1
      %v1178 = vrot.slane %v923, 1
      %v1179 = vsel %vm1158, %v1177, %v1178
      %v1180 = vrot.slane %v876, 1
      %v1181 = vrot.slane %v924, 1
      %v1182 = vsel %vm1158, %v1180, %v1181
      %v1183 = vrot.slane %v877, 1
      %v1184 = vrot.slane %v925, 1
      %v1185 = vsel %vm1158, %v1183, %v1184
      %v1186 = vrot.slane %v878, 1
      %v1187 = vrot.slane %v926, 1
      %v1188 = vsel %vm1158, %v1186, %v1187
      %v1189 = vrot.slane %v879, 1
      %v1190 = vrot.slane %v927, 1
      %v1191 = vsel %vm1158, %v1189, %v1190
      %v1192 = vrot.slane %v880, 1
      %v1193 = vrot.slane %v928, 1
      %v1194 = vsel %vm1158, %v1192, %v1193
      %v1195 = vrot.slane %v881, 1
      %v1196 = vrot.slane %v929, 1
      %v1197 = vsel %vm1158, %v1195, %v1196
      %v1198 = vrot.slane %v882, 1
      %v1199 = vrot.slane %v930, 1
      %v1200 = vsel %vm1158, %v1198, %v1199
      %v1201 = vrot.slane %v883, 1
      %v1202 = vrot.slane %v931, 1
      %v1203 = vsel %vm1158, %v1201, %v1202
      %v1204 = vrot.slane %v884, 1
      %v1205 = vrot.slane %v932, 1
      %v1206 = vsel %vm1158, %v1204, %v1205
      %1207 = vrot.lane.b32.xlu0 %v1161, 8
      %v1208 = vpop.permute.xlu0 %1207
      %1209 = vrot.lane.b32.xlu0 %v1164, 8
      %v1210 = vpop.permute.xlu0 %1209
      %1211 = vrot.lane.b32.xlu0 %v1167, 8
      %v1212 = vpop.permute.xlu0 %1211
      %1213 = vrot.lane.b32.xlu0 %v1170, 8
      %v1214 = vpop.permute.xlu0 %1213
      %1215 = vrot.lane.b32.xlu0 %v1173, 8
      %v1216 = vpop.permute.xlu0 %1215
      %1217 = vrot.lane.b32.xlu0 %v1176, 8
      %v1218 = vpop.permute.xlu0 %1217
      %1219 = vrot.lane.b32.xlu0 %v1179, 8
      %v1220 = vpop.permute.xlu0 %1219
      %1221 = vrot.lane.b32.xlu0 %v1182, 8
      %v1222 = vpop.permute.xlu0 %1221
      %1223 = vrot.lane.b32.xlu0 %v1185, 8
      %v1224 = vpop.permute.xlu0 %1223
      %1225 = vrot.lane.b32.xlu0 %v1188, 8
      %v1226 = vpop.permute.xlu0 %1225
      %1227 = vrot.lane.b32.xlu0 %v1191, 8
      %v1228 = vpop.permute.xlu0 %1227
      %1229 = vrot.lane.b32.xlu0 %v1194, 8
      %v1230 = vpop.permute.xlu0 %1229
      %1231 = vrot.lane.b32.xlu0 %v1197, 8
      %v1232 = vpop.permute.xlu0 %1231
      %1233 = vrot.lane.b32.xlu0 %v1200, 8
      %v1234 = vpop.permute.xlu0 %1233
      %1235 = vrot.lane.b32.xlu0 %v1203, 8
      %v1236 = vpop.permute.xlu0 %1235
      %1237 = vrot.lane.b32.xlu0 %v1206, 8
      %v1238 = vpop.permute.xlu0 %1237
      %v1241 = vunpack.c.l.b16 %v799
      %v1242 = vunpack.c.l.b16 %v800
      %v1243 = vpack.c.b16 %v1242, %v1241
      %1244 = vrot.lane.b32.xlu0 %v870, 12
      %v1245 = vpop.permute.xlu0 %1244
      %1246 = vrot.lane.b32.xlu0 %v871, 12
      %v1247 = vpop.permute.xlu0 %1246
      %1248 = vrot.lane.b32.xlu0 %v872, 12
      %v1249 = vpop.permute.xlu0 %1248
      %1250 = vrot.lane.b32.xlu0 %v873, 12
      %v1251 = vpop.permute.xlu0 %1250
      %1252 = vrot.lane.b32.xlu0 %v874, 12
      %v1253 = vpop.permute.xlu0 %1252
      %1254 = vrot.lane.b32.xlu0 %v875, 12
      %v1255 = vpop.permute.xlu0 %1254
      %1256 = vrot.lane.b32.xlu0 %v876, 12
      %v1257 = vpop.permute.xlu0 %1256
      %1258 = vrot.lane.b32.xlu0 %v877, 12
      %v1259 = vpop.permute.xlu0 %1258
      %1260 = vrot.lane.b32.xlu0 %v878, 12
      %v1261 = vpop.permute.xlu0 %1260
      %1262 = vrot.lane.b32.xlu0 %v879, 12
      %v1263 = vpop.permute.xlu0 %1262
      %1264 = vrot.lane.b32.xlu0 %v880, 12
      %v1265 = vpop.permute.xlu0 %1264
      %1266 = vrot.lane.b32.xlu0 %v881, 12
      %v1267 = vpop.permute.xlu0 %1266
      %1268 = vrot.lane.b32.xlu0 %v882, 12
      %v1269 = vpop.permute.xlu0 %1268
      %1270 = vrot.lane.b32.xlu0 %v883, 12
      %v1271 = vpop.permute.xlu0 %1270
      %1272 = vrot.lane.b32.xlu0 %v884, 12
      %v1273 = vpop.permute.xlu0 %1272
      %1274 = vrot.lane.b32.xlu0 %v1243, 12
      %v1275 = vpop.permute.xlu0 %1274
      %v1277 = vunpack.c.l.b16 %v801
      %v1278 = vpack.c.b16 %v1277, %v1277
      %v1280 = vshrl.u32 %v1243, 16
      %v1282 = vshll.u32 %v1243, 16
      %v1284 = vrot.slane %v1282, 1
      %v1285 = vor.u32 %v1280, %v1284
      %v1287 = vshll.u32 %v1278, 16
      %v1289 = vrot.slane %v1287, 1
      %v1290 = vsel %vm933, %v1285, %v1289
      %1291 = vrot.lane.b32.xlu0 %v957, 16
      %v1292 = vpop.permute.xlu0 %1291
      %1293 = vrot.lane.b32.xlu0 %v969, 16
      %v1294 = vpop.permute.xlu0 %1293
      %1295 = vrot.lane.b32.xlu0 %v981, 16
      %v1296 = vpop.permute.xlu0 %1295
      %1297 = vrot.lane.b32.xlu0 %v993, 16
      %v1298 = vpop.permute.xlu0 %1297
      %1299 = vrot.lane.b32.xlu0 %v1005, 16
      %v1300 = vpop.permute.xlu0 %1299
      %1301 = vrot.lane.b32.xlu0 %v1017, 16
      %v1302 = vpop.permute.xlu0 %1301
      %1303 = vrot.lane.b32.xlu0 %v1029, 16
      %v1304 = vpop.permute.xlu0 %1303
      %1305 = vrot.lane.b32.xlu0 %v1041, 16
      %v1306 = vpop.permute.xlu0 %1305
      %1307 = vrot.lane.b32.xlu0 %v1053, 16
      %v1308 = vpop.permute.xlu0 %1307
      %1309 = vrot.lane.b32.xlu0 %v1065, 16
      %v1310 = vpop.permute.xlu0 %1309
      %1311 = vrot.lane.b32.xlu0 %v1077, 16
      %v1312 = vpop.permute.xlu0 %1311
      %1313 = vrot.lane.b32.xlu0 %v1089, 16
      %v1314 = vpop.permute.xlu0 %1313
      %1315 = vrot.lane.b32.xlu0 %v1101, 16
      %v1316 = vpop.permute.xlu0 %1315
      %1317 = vrot.lane.b32.xlu0 %v1113, 16
      %v1318 = vpop.permute.xlu0 %1317
      %1319 = vrot.lane.b32.xlu0 %v1125, 16
      %v1320 = vpop.permute.xlu0 %1319
      %1321 = vrot.lane.b32.xlu0 %v1290, 16
      %v1322 = vpop.permute.xlu0 %1321
      %v1323 = vrot.slane %v1243, 1
      %v1324 = vrot.slane %v1278, 1
      %v1325 = vsel %vm1158, %v1323, %v1324
      %1326 = vrot.lane.b32.xlu0 %v1164, 20
      %v1327 = vpop.permute.xlu0 %1326
      %1328 = vrot.lane.b32.xlu0 %v1167, 20
      %v1329 = vpop.permute.xlu0 %1328
      %1330 = vrot.lane.b32.xlu0 %v1170, 20
      %v1331 = vpop.permute.xlu0 %1330
      %1332 = vrot.lane.b32.xlu0 %v1173, 20
      %v1333 = vpop.permute.xlu0 %1332
      %1334 = vrot.lane.b32.xlu0 %v1176, 20
      %v1335 = vpop.permute.xlu0 %1334
      %1336 = vrot.lane.b32.xlu0 %v1179, 20
      %v1337 = vpop.permute.xlu0 %1336
      %1338 = vrot.lane.b32.xlu0 %v1182, 20
      %v1339 = vpop.permute.xlu0 %1338
      %1340 = vrot.lane.b32.xlu0 %v1185, 20
      %v1341 = vpop.permute.xlu0 %1340
      %1342 = vrot.lane.b32.xlu0 %v1188, 20
      %v1343 = vpop.permute.xlu0 %1342
      %1344 = vrot.lane.b32.xlu0 %v1191, 20
      %v1345 = vpop.permute.xlu0 %1344
      %1346 = vrot.lane.b32.xlu0 %v1194, 20
      %v1347 = vpop.permute.xlu0 %1346
      %1348 = vrot.lane.b32.xlu0 %v1197, 20
      %v1349 = vpop.permute.xlu0 %1348
      %1350 = vrot.lane.b32.xlu0 %v1200, 20
      %v1351 = vpop.permute.xlu0 %1350
      %1352 = vrot.lane.b32.xlu0 %v1203, 20
      %v1353 = vpop.permute.xlu0 %1352
      %1354 = vrot.lane.b32.xlu0 %v1206, 20
      %v1355 = vpop.permute.xlu0 %1354
      %1356 = vrot.lane.b32.xlu0 %v1325, 20
      %v1357 = vpop.permute.xlu0 %1356
      %v1360 = vunpack.c.l.b16 %v802
      %v1361 = vunpack.c.l.b16 %v803
      %v1362 = vpack.c.b16 %v1361, %v1360
      %1363 = vrot.lane.b32.xlu0 %v871, 24
      %v1364 = vpop.permute.xlu0 %1363
      %1365 = vrot.lane.b32.xlu0 %v872, 24
      %v1366 = vpop.permute.xlu0 %1365
      %1367 = vrot.lane.b32.xlu0 %v873, 24
      %v1368 = vpop.permute.xlu0 %1367
      %1369 = vrot.lane.b32.xlu0 %v874, 24
      %v1370 = vpop.permute.xlu0 %1369
      %1371 = vrot.lane.b32.xlu0 %v875, 24
      %v1372 = vpop.permute.xlu0 %1371
      %1373 = vrot.lane.b32.xlu0 %v876, 24
      %v1374 = vpop.permute.xlu0 %1373
      %1375 = vrot.lane.b32.xlu0 %v877, 24
      %v1376 = vpop.permute.xlu0 %1375
      %1377 = vrot.lane.b32.xlu0 %v878, 24
      %v1378 = vpop.permute.xlu0 %1377
      %1379 = vrot.lane.b32.xlu0 %v879, 24
      %v1380 = vpop.permute.xlu0 %1379
      %1381 = vrot.lane.b32.xlu0 %v880, 24
      %v1382 = vpop.permute.xlu0 %1381
      %1383 = vrot.lane.b32.xlu0 %v881, 24
      %v1384 = vpop.permute.xlu0 %1383
      %1385 = vrot.lane.b32.xlu0 %v882, 24
      %v1386 = vpop.permute.xlu0 %1385
      %1387 = vrot.lane.b32.xlu0 %v883, 24
      %v1388 = vpop.permute.xlu0 %1387
      %1389 = vrot.lane.b32.xlu0 %v884, 24
      %v1390 = vpop.permute.xlu0 %1389
      %1391 = vrot.lane.b32.xlu0 %v1243, 24
      %v1392 = vpop.permute.xlu0 %1391
      %1393 = vrot.lane.b32.xlu0 %v1362, 24
      %v1394 = vpop.permute.xlu0 %1393
      %v1396 = vunpack.c.l.b16 %v804
      %v1397 = vpack.c.b16 %v1396, %v1396
      %v1399 = vshrl.u32 %v1362, 16
      %v1401 = vshll.u32 %v1362, 16
      %v1403 = vrot.slane %v1401, 1
      %v1404 = vor.u32 %v1399, %v1403
      %v1406 = vshll.u32 %v1397, 16
      %v1408 = vrot.slane %v1406, 1
      %v1409 = vsel %vm933, %v1404, %v1408
      %1410 = vrot.lane.b32.xlu0 %v969, 28
      %v1411 = vpop.permute.xlu0 %1410
      %1412 = vrot.lane.b32.xlu0 %v981, 28
      %v1413 = vpop.permute.xlu0 %1412
      %1414 = vrot.lane.b32.xlu0 %v993, 28
      %v1415 = vpop.permute.xlu0 %1414
      %1416 = vrot.lane.b32.xlu0 %v1005, 28
      %v1417 = vpop.permute.xlu0 %1416
      %1418 = vrot.lane.b32.xlu0 %v1017, 28
      %v1419 = vpop.permute.xlu0 %1418
      %1420 = vrot.lane.b32.xlu0 %v1029, 28
      %v1421 = vpop.permute.xlu0 %1420
      %1422 = vrot.lane.b32.xlu0 %v1041, 28
      %v1423 = vpop.permute.xlu0 %1422
      %1424 = vrot.lane.b32.xlu0 %v1053, 28
      %v1425 = vpop.permute.xlu0 %1424
      %1426 = vrot.lane.b32.xlu0 %v1065, 28
      %v1427 = vpop.permute.xlu0 %1426
      %1428 = vrot.lane.b32.xlu0 %v1077, 28
      %v1429 = vpop.permute.xlu0 %1428
      %1430 = vrot.lane.b32.xlu0 %v1089, 28
      %v1431 = vpop.permute.xlu0 %1430
      %1432 = vrot.lane.b32.xlu0 %v1101, 28
      %v1433 = vpop.permute.xlu0 %1432
      %1434 = vrot.lane.b32.xlu0 %v1113, 28
      %v1435 = vpop.permute.xlu0 %1434
      %1436 = vrot.lane.b32.xlu0 %v1125, 28
      %v1437 = vpop.permute.xlu0 %1436
      %1438 = vrot.lane.b32.xlu0 %v1290, 28
      %v1439 = vpop.permute.xlu0 %1438
      %1440 = vrot.lane.b32.xlu0 %v1409, 28
      %v1441 = vpop.permute.xlu0 %1440
      %v1442 = vrot.slane %v1362, 1
      %v1443 = vrot.slane %v1397, 1
      %v1444 = vsel %vm1158, %v1442, %v1443
      %1445 = vrot.lane.b32.xlu0 %v1167, 32
      %v1446 = vpop.permute.xlu0 %1445
      %1447 = vrot.lane.b32.xlu0 %v1170, 32
      %v1448 = vpop.permute.xlu0 %1447
      %1449 = vrot.lane.b32.xlu0 %v1173, 32
      %v1450 = vpop.permute.xlu0 %1449
      %1451 = vrot.lane.b32.xlu0 %v1176, 32
      %v1452 = vpop.permute.xlu0 %1451
      %1453 = vrot.lane.b32.xlu0 %v1179, 32
      %v1454 = vpop.permute.xlu0 %1453
      %1455 = vrot.lane.b32.xlu0 %v1182, 32
      %v1456 = vpop.permute.xlu0 %1455
      %1457 = vrot.lane.b32.xlu0 %v1185, 32
      %v1458 = vpop.permute.xlu0 %1457
      %1459 = vrot.lane.b32.xlu0 %v1188, 32
      %v1460 = vpop.permute.xlu0 %1459
      %1461 = vrot.lane.b32.xlu0 %v1191, 32
      %v1462 = vpop.permute.xlu0 %1461
      %1463 = vrot.lane.b32.xlu0 %v1194, 32
      %v1464 = vpop.permute.xlu0 %1463
      %1465 = vrot.lane.b32.xlu0 %v1197, 32
      %v1466 = vpop.permute.xlu0 %1465
      %1467 = vrot.lane.b32.xlu0 %v1200, 32
      %v1468 = vpop.permute.xlu0 %1467
      %1469 = vrot.lane.b32.xlu0 %v1203, 32
      %v1470 = vpop.permute.xlu0 %1469
      %1471 = vrot.lane.b32.xlu0 %v1206, 32
      %v1472 = vpop.permute.xlu0 %1471
      %1473 = vrot.lane.b32.xlu0 %v1325, 32
      %v1474 = vpop.permute.xlu0 %1473
      %1475 = vrot.lane.b32.xlu0 %v1444, 32
      %v1476 = vpop.permute.xlu0 %1475
      %vm1477 = vcmask 31744
      %v1479 = vsel %vm1477, %v869, %v1127
      %v1481 = vsel %vm1477, %v870, %v1129
      %v1483 = vsel %vm1477, %v871, %v1131
      %v1485 = vsel %vm1477, %v872, %v1133
      %v1487 = vsel %vm1477, %v873, %v1135
      %v1489 = vsel %vm1477, %v874, %v1137
      %v1491 = vsel %vm1477, %v875, %v1139
      %v1493 = vsel %vm1477, %v876, %v1141
      %v1495 = vsel %vm1477, %v877, %v1143
      %v1497 = vsel %vm1477, %v878, %v1145
      %v1499 = vsel %vm1477, %v879, %v1147
      %v1501 = vsel %vm1477, %v880, %v1149
      %v1503 = vsel %vm1477, %v881, %v1151
      %v1505 = vsel %vm1477, %v882, %v1153
      %v1507 = vsel %vm1477, %v883, %v1155
      %v1509 = vsel %vm1477, %v884, %v1157
      %vm1510 = vcmask 64512
      %v1512 = vsel %vm1510, %v1479, %v1208
      %v1514 = vsel %vm1510, %v1481, %v1210
      %v1516 = vsel %vm1510, %v1483, %v1212
      %v1518 = vsel %vm1510, %v1485, %v1214
      %v1520 = vsel %vm1510, %v1487, %v1216
      %v1522 = vsel %vm1510, %v1489, %v1218
      %v1524 = vsel %vm1510, %v1491, %v1220
      %v1526 = vsel %vm1510, %v1493, %v1222
      %v1528 = vsel %vm1510, %v1495, %v1224
      %v1530 = vsel %vm1510, %v1497, %v1226
      %v1532 = vsel %vm1510, %v1499, %v1228
      %v1534 = vsel %vm1510, %v1501, %v1230
      %v1536 = vsel %vm1510, %v1503, %v1232
      %v1538 = vsel %vm1510, %v1505, %v1234
      %v1540 = vsel %vm1510, %v1507, %v1236
      %v1542 = vsel %vm1510, %v1509, %v1238
      %vm1543 = vcmask 97280
      %v1545 = vsel %vm1543, %v1512, %v1245
      %v1547 = vsel %vm1543, %v1514, %v1247
      %v1549 = vsel %vm1543, %v1516, %v1249
      %v1551 = vsel %vm1543, %v1518, %v1251
      %v1553 = vsel %vm1543, %v1520, %v1253
      %v1555 = vsel %vm1543, %v1522, %v1255
      %v1557 = vsel %vm1543, %v1524, %v1257
      %v1559 = vsel %vm1543, %v1526, %v1259
      %v1561 = vsel %vm1543, %v1528, %v1261
      %v1563 = vsel %vm1543, %v1530, %v1263
      %v1565 = vsel %vm1543, %v1532, %v1265
      %v1567 = vsel %vm1543, %v1534, %v1267
      %v1569 = vsel %vm1543, %v1536, %v1269
      %v1571 = vsel %vm1543, %v1538, %v1271
      %v1573 = vsel %vm1543, %v1540, %v1273
      %v1575 = vsel %vm1543, %v1542, %v1275
      %vm1576 = vcmask 130048
      %v1578 = vsel %vm1576, %v1545, %v1292
      %v1580 = vsel %vm1576, %v1547, %v1294
      %v1582 = vsel %vm1576, %v1549, %v1296
      %v1584 = vsel %vm1576, %v1551, %v1298
      %v1586 = vsel %vm1576, %v1553, %v1300
      %v1588 = vsel %vm1576, %v1555, %v1302
      %v1590 = vsel %vm1576, %v1557, %v1304
      %v1592 = vsel %vm1576, %v1559, %v1306
      %v1594 = vsel %vm1576, %v1561, %v1308
      %v1596 = vsel %vm1576, %v1563, %v1310
      %v1598 = vsel %vm1576, %v1565, %v1312
      %v1600 = vsel %vm1576, %v1567, %v1314
      %v1602 = vsel %vm1576, %v1569, %v1316
      %v1604 = vsel %vm1576, %v1571, %v1318
      %v1606 = vsel %vm1576, %v1573, %v1320
      %v1608 = vsel %vm1576, %v1575, %v1322
      %vm1609 = vcmask 162816
      %v1611 = vsel %vm1609, %v1578, %v1327
      %v1613 = vsel %vm1609, %v1580, %v1329
      %v1615 = vsel %vm1609, %v1582, %v1331
      %v1617 = vsel %vm1609, %v1584, %v1333
      %v1619 = vsel %vm1609, %v1586, %v1335
      %v1621 = vsel %vm1609, %v1588, %v1337
      %v1623 = vsel %vm1609, %v1590, %v1339
      %v1625 = vsel %vm1609, %v1592, %v1341
      %v1627 = vsel %vm1609, %v1594, %v1343
      %v1629 = vsel %vm1609, %v1596, %v1345
      %v1631 = vsel %vm1609, %v1598, %v1347
      %v1633 = vsel %vm1609, %v1600, %v1349
      %v1635 = vsel %vm1609, %v1602, %v1351
      %v1637 = vsel %vm1609, %v1604, %v1353
      %v1639 = vsel %vm1609, %v1606, %v1355
      %v1641 = vsel %vm1609, %v1608, %v1357
      %vm1642 = vcmask 195584
      %v1644 = vsel %vm1642, %v1611, %v1364
      %v1646 = vsel %vm1642, %v1613, %v1366
      %v1648 = vsel %vm1642, %v1615, %v1368
      %v1650 = vsel %vm1642, %v1617, %v1370
      %v1652 = vsel %vm1642, %v1619, %v1372
      %v1654 = vsel %vm1642, %v1621, %v1374
      %v1656 = vsel %vm1642, %v1623, %v1376
      %v1658 = vsel %vm1642, %v1625, %v1378
      %v1660 = vsel %vm1642, %v1627, %v1380
      %v1662 = vsel %vm1642, %v1629, %v1382
      %v1664 = vsel %vm1642, %v1631, %v1384
      %v1666 = vsel %vm1642, %v1633, %v1386
      %v1668 = vsel %vm1642, %v1635, %v1388
      %v1670 = vsel %vm1642, %v1637, %v1390
      %v1672 = vsel %vm1642, %v1639, %v1392
      %v1674 = vsel %vm1642, %v1641, %v1394
      %vm1675 = vcmask 228352
      %v1677 = vsel %vm1675, %v1644, %v1411
      %v1679 = vsel %vm1675, %v1646, %v1413
      %v1681 = vsel %vm1675, %v1648, %v1415
      %v1683 = vsel %vm1675, %v1650, %v1417
      %v1685 = vsel %vm1675, %v1652, %v1419
      %v1687 = vsel %vm1675, %v1654, %v1421
      %v1689 = vsel %vm1675, %v1656, %v1423
      %v1691 = vsel %vm1675, %v1658, %v1425
      %v1693 = vsel %vm1675, %v1660, %v1427
      %v1695 = vsel %vm1675, %v1662, %v1429
      %v1697 = vsel %vm1675, %v1664, %v1431
      %v1699 = vsel %vm1675, %v1666, %v1433
      %v1701 = vsel %vm1675, %v1668, %v1435
      %v1703 = vsel %vm1675, %v1670, %v1437
      %v1705 = vsel %vm1675, %v1672, %v1439
      %v1707 = vsel %vm1675, %v1674, %v1441
      %vm1708 = vcmask 261120
      %v1710 = vsel %vm1708, %v1677, %v1446
      %v1712 = vsel %vm1708, %v1679, %v1448
      %v1714 = vsel %vm1708, %v1681, %v1450
      %v1716 = vsel %vm1708, %v1683, %v1452
      %v1718 = vsel %vm1708, %v1685, %v1454
      %v1720 = vsel %vm1708, %v1687, %v1456
      %v1722 = vsel %vm1708, %v1689, %v1458
      %v1724 = vsel %vm1708, %v1691, %v1460
      %v1726 = vsel %vm1708, %v1693, %v1462
      %v1728 = vsel %vm1708, %v1695, %v1464
      %v1730 = vsel %vm1708, %v1697, %v1466
      %v1732 = vsel %vm1708, %v1699, %v1468
      %v1734 = vsel %vm1708, %v1701, %v1470
      %v1736 = vsel %vm1708, %v1703, %v1472
      %v1738 = vsel %vm1708, %v1705, %v1474
      %v1740 = vsel %vm1708, %v1707, %v1476
      %v1741 = vld [vmem:[%s1] sm:$0xf]
      %v1742 = vld [vmem:[%s2] sm:$0xff]
      %1744 = vset.pattern.permute.xlu0 0
      %1745 = vperm.xlu0 %1744, %v1742
      %v1746 = vpop.permute.xlu0 %1745
      %vm1748 = vcmask 293888
      %v1750 = vsel %vm1748, %v1741, 0
      %v1752 = vsel %vm1748, %v1710, 0
      %v1754 = vsel %vm1748, %v1712, 0
      %v1756 = vsel %vm1748, %v1714, 0
      %v1758 = vsel %vm1748, %v1716, 0
      %v1760 = vsel %vm1748, %v1718, 0
      %v1762 = vsel %vm1748, %v1720, 0
      %v1764 = vsel %vm1748, %v1722, 0
      %v1766 = vsel %vm1748, %v1724, 0
      %v1768 = vsel %vm1748, %v1726, 0
      %v1770 = vsel %vm1748, %v1728, 0
      %v1772 = vsel %vm1748, %v1730, 0
      %v1774 = vsel %vm1748, %v1732, 0
      %v1776 = vsel %vm1748, %v1734, 0
      %v1778 = vsel %vm1748, %v1736, 0
      %v1780 = vsel %vm1748, %v1738, 0
      %v1782 = vsel %vm1748, %v1740, 0
      %1784 = vmatprep.subr.bf16.mxu0 0
      %1785 = vmatpush1.bf16.xpose.msra.mxu0 %v1766
      %1786 = vmatprep.subr.bf16.mxu0 0
      %1787 = vmatpush1.bf16.xpose.msra.mxu0 %v1764
      %1788 = vmatprep.subr.bf16.mxu0 0
      %1789 = vmatpush1.bf16.xpose.msra.mxu0 %v1762
      %1790 = vmatprep.subr.bf16.mxu0 0
      %1791 = vmatpush1.bf16.xpose.msra.mxu0 %v1760
      %1792 = vmatprep.subr.bf16.mxu0 0
      %1793 = vmatpush1.bf16.xpose.msra.mxu0 %v1758
      %1794 = vmatprep.subr.bf16.mxu0 0
      %1795 = vmatpush1.bf16.xpose.msra.mxu0 %v1756
      %1796 = vmatprep.subr.bf16.mxu0 0
      %1797 = vmatpush1.bf16.xpose.msra.mxu0 %v1754
      %1798 = vmatprep.subr.bf16.mxu0 0
      %1799 = vmatpush1.bf16.xpose.msra.mxu0 %v1752
      %1800 = vmatprep.subr.bf16.mxu0 0
      %1801 = vmatpush2.bf16.xpose.msra.mxu0 %v1782
      %1802 = vmatprep.subr.bf16.mxu0 0
      %1803 = vmatpush2.bf16.xpose.msra.mxu0 %v1780
      %1804 = vmatprep.subr.bf16.mxu0 0
      %1805 = vmatpush2.bf16.xpose.msra.mxu0 %v1778
      %1806 = vmatprep.subr.bf16.mxu0 0
      %1807 = vmatpush2.bf16.xpose.msra.mxu0 %v1776
      %1808 = vmatprep.subr.bf16.mxu0 0
      %1809 = vmatpush2.bf16.xpose.msra.mxu0 %v1774
      %1810 = vmatprep.subr.bf16.mxu0 0
      %1811 = vmatpush2.bf16.xpose.msra.mxu0 %v1772
      %1812 = vmatprep.subr.bf16.mxu0 0
      %1813 = vmatpush2.bf16.xpose.msra.mxu0 %v1770
      %1814 = vmatprep.subr.bf16.mxu0 0
      %1815 = vmatpush2.bf16.xpose.msra.mxu0 %v1768
      %1816 = vmatprep.mubr.bf16.mxu0 0
      %1817 = vmatmul.mubr.bf16.gmra.mxu0 %v1750
      %v1818 = vpop.f32.mrf.mxu0
      %v1819 = vadd.f32 %v1746, %v1818
      %v1820 = vpop.f32.mrf.mxu0
      %v1821 = vadd.f32 %v1746, %v1820
      %v1822 = vpop.f32.mrf.mxu0
      %v1823 = vpop.f32.mrf.mxu0
      %1824 = vdwg.mxu0
      %1825 = vst [vmem:[%s170] sm:$0xff] %v1819
      %1826 = vst [vmem:[%s170 + $0x8] sm:$0xff] %v1821
      %p1827 = scmp.lt.s32.totalorder %s14, 1
      %s1828 = scalar_select %p1827, %s14, 1
      %s1829 = smul.addr %s1828, 2
      %s1830 = smul.addr %s1829, 8
      %s1831 = scalar_lea.vmem %s3, %s1830
      // Predicated region
      $region33: #{cnn_block_forward.1} parent=31 // pred_check
        %p1832 = pneg %p100
      $region34: #{cnn_block_forward.1} parent=31 // pred_check_branch
        %1834 = sbr.rel (%p1832) target = $region36
      $region35: #{cnn_block_forward.1} parent=31 // pred_region
        _
      $region36: #{cnn_block_forward.1} parent=31 // pred_fallthru
        _
    $region32: #{cnn_block_forward.1} parent=5 // pred_fallthru
      _
    %p1835 = scmp.le.s32.totalorder 2, %s9
    // Predicated region
    $region37: #{cnn_block_forward.1} parent=5 // pred_check
      %p1836 = pneg %p1835
    $region38: #{cnn_block_forward.1} parent=5 // pred_check_branch
      %1838 = sbr.rel (%p1836) target = $region40
    $region39: #{cnn_block_forward.1} parent=5 // pred_region
      %s1839 = ssub.s32 %s9, 2
      // Predicated region
      $region41: #{cnn_block_forward.1} parent=39 // pred_check
        %p1840 = pneg %p106
      $region42: #{cnn_block_forward.1} parent=39 // pred_check_branch
        %1842 = sbr.rel (%p1840) target = $region44
      $region43: #{cnn_block_forward.1} parent=39 // pred_region
        %p1843 = scmp.lt.s32.totalorder %s15, 1
        %s1844 = scalar_select %p1843, %s15, 1
        %s1845 = smul.addr %s1844, 2
        %s1846 = smul.addr %s1845, 8
        %s1847 = scalar_lea.vmem %s3, %s1846
      $region44: #{cnn_block_forward.1} parent=39 // pred_fallthru
        _
    $region40: #{cnn_block_forward.1} parent=5 // pred_fallthru
      _
  $region6: #{cnn_block_forward.1} parent=0 // loop_footer
    %s13 = sadd.s32 1, %s9
  $region7: #{cnn_block_forward.1} parent=0 // loop_footer_branch
    %8 = sbr.rel target = $region3
  $region8: #{cnn_block_forward.1} parent=0 // loop_exit
    _

</llo_original>
